<compile_context>
chip_gen: v5e
topology: v5e:2x2
jax: 0.10.0
libtpu: 0.0.40
codegen_flags: <defaults>
</compile_context>

<pallas_src>
import functools

import jax
import jax.numpy as jnp
from jax.experimental import pallas as pl
from jax.experimental.pallas import tpu as pltpu

NEG_SLOPE = 0.05  # activation('lrelu') default in the reference module


# --------------------------------------------------------------------------
# Fused MainBlock kernel: one grid step == one batch element.
# --------------------------------------------------------------------------
def _main_block_kernel(x_ref, masks_ref,
                       wstage_ref, bstage_ref,
                       wf3_ref, bf3_ref, wfuse_ref, bfuse_ref,
                       wcca1t_ref, bcca1_ref, wcca2_ref, bcca2_ref,
                       o_ref, *, W):
    x = x_ref[0]                       # (C, H*W) float32, lane-dense
    C, HW = x.shape
    Ch = wstage_ref.shape[1] - C       # in_channels // 2 (== 8 here, tile-aligned)
    P = W + 1                          # flat zero pad covering any row shift

    not_left = masks_ref[0:1, :]       # (1, HW): 0.0 where col == 0
    not_right = masks_ref[1:2, :]      # (1, HW): 0.0 where col == W-1

    def lrelu(v):
        return jnp.where(v >= 0, v, NEG_SLOPE * v)

    def im2col(inp):
        """inp: (Cin, HW) -> (9*Cin, HW) in-register im2col.

        9 shifted views of the flat spatial axis: zero pads handle H
        boundaries, lane masks handle W boundaries.
        """
        Cin = inp.shape[0]
        zp = jnp.zeros((Cin, P), jnp.float32)
        xp = jnp.concatenate([zp, inp, zp], axis=1)        # (Cin, HW + 2P)
        taps = []
        for dy in range(3):
            for dx in range(3):
                s = (dy - 1) * W + (dx - 1)                # flattened shift
                t = xp[:, P + s:P + s + HW]                # (Cin, HW)
                if dx == 0:
                    t = t * not_left
                elif dx == 2:
                    t = t * not_right
                taps.append(t)
        return jnp.concatenate(taps, axis=0)               # (9*Cin, HW)

    now = x
    feats = []
    for i in range(3):
        # Stacked matmul: rows [0:Ch] = conv1x1s[i] (center tap only),
        #                 rows [Ch:]  = SRB conv3x3.
        patches = im2col(now)                                          # (9C, HW)
        y = jnp.dot(wstage_ref[i], patches,
                    preferred_element_type=jnp.float32) + bstage_ref[i]
        feats.append(lrelu(y[:Ch]))                                    # (C//2, HW)
        now = lrelu(y[Ch:] + now)                                      # SRB residual

    # conv3x3 branch: Conv2d(C, C//2, 3, 1, 1) + LeakyReLU
    patches = im2col(now)
    feats.append(lrelu(jnp.dot(wf3_ref[...], patches,
                               preferred_element_type=jnp.float32) + bf3_ref[...]))

    # concat (VMEM only) + fuse 1x1 + LeakyReLU
    features = jnp.concatenate(feats, axis=0)                          # (2C, HW)
    out = lrelu(jnp.dot(wfuse_ref[...], features,
                        preferred_element_type=jnp.float32) + bfuse_ref[...])

    # CCA: y = stdv_channels(out) + avg_pool(out)   (population std, /HW)
    inv_hw = 1.0 / float(HW)
    mean = jnp.sum(out, axis=1, keepdims=True) * inv_hw                # (C, 1)
    var = jnp.sum((out - mean) ** 2, axis=1, keepdims=True) * inv_hw
    stats = jnp.sqrt(var) + mean                                       # (C, 1)

    # Tiny CCA MLP (C -> C//8 -> C) on the VPU via broadcast + reduce.
    y1 = lrelu(jnp.sum(wcca1t_ref[...] * stats, axis=0, keepdims=True)
               + bcca1_ref[...])                                       # (1, Cr)
    y2 = jnp.sum(wcca2_ref[...] * y1, axis=1, keepdims=True) + bcca2_ref[...]
    y2 = 1.0 / (1.0 + jnp.exp(-y2))                                    # (C, 1)

    # out * y (CCA scale) + x (MainBlock final residual)
    o_ref[0] = (out * y2 + x).astype(o_ref.dtype)


# --------------------------------------------------------------------------
# Wrapper: NCHW in / NCHW out (PyTorch convention).  NCHW already has the
# channel-major layout the kernel wants, so only free reshapes at the boundary.
# --------------------------------------------------------------------------
def main_block_forward(params, x_nchw):
    N, C, H, W = x_nchw.shape
    HW = H * W
    Ch = C // 2
    x = x_nchw.reshape(N, C, HW).astype(jnp.float32)

    # Lane masks for the W-boundary taps of the flat im2col.
    col = jnp.arange(HW, dtype=jnp.int32) % W
    masks = jnp.stack([(col != 0).astype(jnp.float32),
                       (col != W - 1).astype(jnp.float32)])            # (2, HW)

    # Pack conv1x1s[i] (center tap of the 3x3 im2col) on top of the SRB 3x3
    # weight so each stage is a single (Ch+C, 9C) @ (9C, HW) matmul.
    w1x1_emb = jnp.zeros((3, Ch, 9 * C), jnp.float32)
    w1x1_emb = w1x1_emb.at[:, :, 4 * C:5 * C].set(params["w1x1"])
    wstage = jnp.concatenate([w1x1_emb, params["wsrb"]], axis=1)       # (3, Ch+C, 9C)
    bstage = jnp.concatenate([params["b1x1"], params["bsrb"]], axis=1)  # (3, Ch+C, 1)

    def fixed(arr):
        nd = arr.ndim
        return pl.BlockSpec(arr.shape, lambda n, nd=nd: (0,) * nd)

    in_specs = [
        pl.BlockSpec((1, C, HW), lambda n: (n, 0, 0)),   # x, per-batch block
        fixed(masks),
        fixed(wstage), fixed(bstage),
        fixed(params["wf3"]), fixed(params["bf3"]),
        fixed(params["wfuse"]), fixed(params["bfuse"]),
        fixed(params["wcca1_t"]), fixed(params["bcca1"]),
        fixed(params["wcca2"]), fixed(params["bcca2"]),
    ]

    # NOTE: for much larger H*W, switch the x/out BlockSpecs to row-band tiles
    # with a 1-row halo; at these sizes full-image blocks are far below the
    # VMEM limit on all generations.
    out = pl.pallas_call(
        functools.partial(_main_block_kernel, W=W),
        out_shape=jax.ShapeDtypeStruct((N, C, HW), jnp.float32),
        grid=(N,),
        in_specs=in_specs,
        out_specs=pl.BlockSpec((1, C, HW), lambda n: (n, 0, 0)),
        compiler_params=pltpu.CompilerParams(
            dimension_semantics=("parallel",)),
    )(x, masks, wstage, bstage,
      params["wf3"], params["bf3"], params["wfuse"], params["bfuse"],
      params["wcca1_t"], params["bcca1"], params["wcca2"], params["bcca2"])

    return out.reshape(N, C, H, W)


# --------------------------------------------------------------------------
# Parameters (deterministic synthetic init).
# --------------------------------------------------------------------------
def init_params(key, C):
    Ch, Cr = C // 2, C // 8
    keys = iter(jax.random.split(key, 16))

    def nrm(shape, scale=0.1):
        return scale * jax.random.normal(next(keys), shape, jnp.float32)

    return {
        "w1x1": nrm((3, Ch, C)),        # conv1x1s[i]: (Cout, Cin)
        "b1x1": nrm((3, Ch, 1)),
        "wsrb": nrm((3, C, 9 * C)),     # SRB conv3x3 (im2col layout)
        "bsrb": nrm((3, C, 1)),
        "wf3": nrm((Ch, 9 * C)),        # final conv3x3 branch
        "bf3": nrm((Ch, 1)),
        "wfuse": nrm((C, 2 * C)),       # conv1x1_act
        "bfuse": nrm((C, 1)),
        "wcca1_t": nrm((C, Cr)),        # CCA conv1 weight, transposed
        "bcca1": nrm((1, Cr)),
        "wcca2": nrm((C, Cr)),          # CCA conv2 weight (torch layout)
        "bcca2": nrm((C, 1)),
    }


# --------------------------------------------------------------------------
# Pure-JAX reference (independent lowering path) for correctness check.
# --------------------------------------------------------------------------
def _reference_forward(params, x):
    N, C, H, W = x.shape
    Ch, Cr = C // 2, C // 8
    hi = jax.lax.Precision.HIGHEST

    def lrelu(v):
        return jnp.where(v >= 0, v, NEG_SLOPE * v)

    def conv3x3_ref(inp, w_flat, b):
        Cout = w_flat.shape[0]
        w4 = w_flat.reshape(Cout, 3, 3, inp.shape[1]).transpose(0, 3, 1, 2)  # OIHW
        y = jax.lax.conv_general_dilated(
            inp, w4, window_strides=(1, 1), padding=((1, 1), (1, 1)),
            dimension_numbers=("NCHW", "OIHW", "NCHW"), precision=hi)
        return y + b.reshape(1, Cout, 1, 1)

    def conv1x1_ref(inp, w, b):
        y = jnp.einsum("nchw,oc->nohw", inp, w, precision=hi)
        return y + b.reshape(1, -1, 1, 1)

    now = x
    feats = []
    for i in range(3):
        feats.append(lrelu(conv1x1_ref(now, params["w1x1"][i], params["b1x1"][i])))
        now = lrelu(conv3x3_ref(now, params["wsrb"][i], params["bsrb"][i]) + now)
    feats.append(lrelu(conv3x3_ref(now, params["wf3"], params["bf3"])))
    features = jnp.concatenate(feats, axis=1)
    out = lrelu(conv1x1_ref(features, params["wfuse"], params["bfuse"]))

    mean = out.mean(axis=(2, 3), keepdims=True)
    var = ((out - mean) ** 2).mean(axis=(2, 3), keepdims=True)
    s = (jnp.sqrt(var) + mean).reshape(N, C)
    y1 = lrelu(jnp.einsum("nc,cr->nr", s, params["wcca1_t"], precision=hi)
               + params["bcca1"].reshape(1, Cr))
    y2 = jax.nn.sigmoid(jnp.einsum("nr,cr->nc", y1, params["wcca2"], precision=hi)
                        + params["bcca2"].reshape(1, C))
    return out * y2.reshape(N, C, 1, 1) + x


if __name__ == "__main__":
    key = jax.random.PRNGKey(0)
    kx, kp = jax.random.split(key)

    N, C, H, W = 2, 16, 16, 16          # NCHW, MainBlock(in_channels=16, ...)
    x = jax.random.normal(kx, (N, C, H, W), jnp.float32)
    params = init_params(kp, C)

    fwd = jax.jit(functools.partial(main_block_forward, params))
    out = fwd(x)
    jax.block_until_ready(out)
    assert out.shape == (N, C, H, W) and out.dtype == jnp.float32

    ref = _reference_forward(params, x)
    max_err = float(jnp.max(jnp.abs(out - ref)))
    assert max_err < 5e-3, f"mismatch vs reference: max abs diff {max_err}"

    print("KERNEL_OK")
</pallas_src>

<mosaic_0001>
module attributes {stable_mosaic.version = 11 : i64} {
  func.func @_main_block_kernel(%arg0: i32, %arg1: memref<1x16x256xf32, #tpu.memory_space<vmem>>, %arg2: memref<2x256xf32, #tpu.memory_space<vmem>>, %arg3: memref<3x24x144xf32, #tpu.memory_space<vmem>>, %arg4: memref<3x24x1xf32, #tpu.memory_space<vmem>>, %arg5: memref<8x144xf32, #tpu.memory_space<vmem>>, %arg6: memref<8x1xf32, #tpu.memory_space<vmem>>, %arg7: memref<16x32xf32, #tpu.memory_space<vmem>>, %arg8: memref<16x1xf32, #tpu.memory_space<vmem>>, %arg9: memref<16x2xf32, #tpu.memory_space<vmem>>, %arg10: memref<1x2xf32, #tpu.memory_space<vmem>>, %arg11: memref<16x2xf32, #tpu.memory_space<vmem>>, %arg12: memref<16x1xf32, #tpu.memory_space<vmem>>, %arg13: memref<1x16x256xf32, #tpu.memory_space<vmem>>) attributes {dimension_semantics = [#tpu.dimension_semantics<parallel>], iteration_bounds = array<i64: 2>, scalar_prefetch = 0 : i64, scratch_operands = 0 : i64, tpu.core_type = #tpu.core_type<tc>, window_params = [{transform_indices = @transform_0, window_bounds = array<i64: 1, 16, 256>}, {pipeline_mode = #tpu.pipeline_mode<synchronous>, transform_indices = @transform_1, window_bounds = array<i64: 2, 256>}, {pipeline_mode = #tpu.pipeline_mode<synchronous>, transform_indices = @transform_2, window_bounds = array<i64: 3, 24, 144>}, {pipeline_mode = #tpu.pipeline_mode<synchronous>, transform_indices = @transform_3, window_bounds = array<i64: 3, 24, 1>}, {pipeline_mode = #tpu.pipeline_mode<synchronous>, transform_indices = @transform_4, window_bounds = array<i64: 8, 144>}, {pipeline_mode = #tpu.pipeline_mode<synchronous>, transform_indices = @transform_5, window_bounds = array<i64: 8, 1>}, {pipeline_mode = #tpu.pipeline_mode<synchronous>, transform_indices = @transform_6, window_bounds = array<i64: 16, 32>}, {pipeline_mode = #tpu.pipeline_mode<synchronous>, transform_indices = @transform_7, window_bounds = array<i64: 16, 1>}, {pipeline_mode = #tpu.pipeline_mode<synchronous>, transform_indices = @transform_8, window_bounds = array<i64: 16, 2>}, {pipeline_mode = #tpu.pipeline_mode<synchronous>, transform_indices = @transform_9, window_bounds = array<i64: 1, 2>}, {pipeline_mode = #tpu.pipeline_mode<synchronous>, transform_indices = @transform_10, window_bounds = array<i64: 16, 2>}, {pipeline_mode = #tpu.pipeline_mode<synchronous>, transform_indices = @transform_11, window_bounds = array<i64: 16, 1>}, {transform_indices = @transform_12, window_bounds = array<i64: 1, 16, 256>}]} {
    %c0 = arith.constant 0 : index
    %c0_0 = arith.constant 0 : index
    %c0_1 = arith.constant 0 : index
    %0 = vector.load %arg1[%c0, %c0_0, %c0_1] : memref<1x16x256xf32, #tpu.memory_space<vmem>>, vector<1x16x256xf32>
    %1 = vector.shape_cast %0 : vector<1x16x256xf32> to vector<16x256xf32>
    %c0_2 = arith.constant 0 : index
    %c0_3 = arith.constant 0 : index
    %2 = vector.load %arg2[%c0_2, %c0_3] : memref<2x256xf32, #tpu.memory_space<vmem>>, vector<1x256xf32>
    %c1 = arith.constant 1 : index
    %c0_4 = arith.constant 0 : index
    %3 = vector.load %arg2[%c1, %c0_4] : memref<2x256xf32, #tpu.memory_space<vmem>>, vector<1x256xf32>
    %cst = arith.constant 0.000000e+00 : f32
    %4 = vector.broadcast %cst : f32 to vector<16x17xf32>
    %5 = tpu.concatenate %4, %1, %4 in 1 : vector<16x17xf32>, vector<16x256xf32>, vector<16x17xf32> -> vector<16x290xf32>
    %6 = vector.extract_strided_slice %5 {offsets = [0, 0], sizes = [16, 256], strides = [1, 1]} : vector<16x290xf32> to vector<16x256xf32>
    %7 = vector.broadcast %2 : vector<1x256xf32> to vector<16x256xf32>
    %8 = arith.mulf %6, %7 : vector<16x256xf32>
    %9 = vector.extract_strided_slice %5 {offsets = [0, 1], sizes = [16, 256], strides = [1, 1]} : vector<16x290xf32> to vector<16x256xf32>
    %10 = vector.extract_strided_slice %5 {offsets = [0, 2], sizes = [16, 256], strides = [1, 1]} : vector<16x290xf32> to vector<16x256xf32>
    %11 = vector.broadcast %3 : vector<1x256xf32> to vector<16x256xf32>
    %12 = arith.mulf %10, %11 : vector<16x256xf32>
    %13 = vector.extract_strided_slice %5 {offsets = [0, 16], sizes = [16, 256], strides = [1, 1]} : vector<16x290xf32> to vector<16x256xf32>
    %14 = vector.broadcast %2 : vector<1x256xf32> to vector<16x256xf32>
    %15 = arith.mulf %13, %14 : vector<16x256xf32>
    %16 = vector.extract_strided_slice %5 {offsets = [0, 17], sizes = [16, 256], strides = [1, 1]} : vector<16x290xf32> to vector<16x256xf32>
    %17 = vector.extract_strided_slice %5 {offsets = [0, 18], sizes = [16, 256], strides = [1, 1]} : vector<16x290xf32> to vector<16x256xf32>
    %18 = vector.broadcast %3 : vector<1x256xf32> to vector<16x256xf32>
    %19 = arith.mulf %17, %18 : vector<16x256xf32>
    %20 = vector.extract_strided_slice %5 {offsets = [0, 32], sizes = [16, 256], strides = [1, 1]} : vector<16x290xf32> to vector<16x256xf32>
    %21 = vector.broadcast %2 : vector<1x256xf32> to vector<16x256xf32>
    %22 = arith.mulf %20, %21 : vector<16x256xf32>
    %23 = vector.extract_strided_slice %5 {offsets = [0, 33], sizes = [16, 256], strides = [1, 1]} : vector<16x290xf32> to vector<16x256xf32>
    %24 = vector.extract_strided_slice %5 {offsets = [0, 34], sizes = [16, 256], strides = [1, 1]} : vector<16x290xf32> to vector<16x256xf32>
    %25 = vector.broadcast %3 : vector<1x256xf32> to vector<16x256xf32>
    %26 = arith.mulf %24, %25 : vector<16x256xf32>
    %27 = tpu.concatenate %8, %9, %12, %15, %16, %19, %22, %23, %26 in 0 : vector<16x256xf32>, vector<16x256xf32>, vector<16x256xf32>, vector<16x256xf32>, vector<16x256xf32>, vector<16x256xf32>, vector<16x256xf32>, vector<16x256xf32>, vector<16x256xf32> -> vector<144x256xf32>
    %c0_5 = arith.constant 0 : index
    %c0_6 = arith.constant 0 : index
    %c0_7 = arith.constant 0 : index
    %28 = vector.load %arg3[%c0_5, %c0_6, %c0_7] : memref<3x24x144xf32, #tpu.memory_space<vmem>>, vector<1x24x144xf32>
    %29 = vector.shape_cast %28 : vector<1x24x144xf32> to vector<24x144xf32>
    %cst_8 = arith.constant dense<0.000000e+00> : vector<24x256xf32>
    %30 = tpu.matmul %29, %27, %cst_8 {dimension_numbers = #tpu.dot_dimension_numbers<[1], [0], [0], [1], [0, 0, 1, 1], [], []>} : vector<24x144xf32>, vector<144x256xf32>, vector<24x256xf32> -> vector<24x256xf32>
    %c0_9 = arith.constant 0 : index
    %c0_10 = arith.constant 0 : index
    %c0_11 = arith.constant 0 : index
    %31 = vector.load %arg4[%c0_9, %c0_10, %c0_11] : memref<3x24x1xf32, #tpu.memory_space<vmem>>, vector<1x24x1xf32>
    %32 = vector.shape_cast %31 : vector<1x24x1xf32> to vector<24x1xf32>
    %33 = vector.broadcast %32 : vector<24x1xf32> to vector<24x256xf32>
    %34 = arith.addf %30, %33 : vector<24x256xf32>
    %35 = vector.extract_strided_slice %34 {offsets = [0, 0], sizes = [8, 256], strides = [1, 1]} : vector<24x256xf32> to vector<8x256xf32>
    %cst_12 = arith.constant 0.000000e+00 : f32
    %36 = vector.broadcast %cst_12 : f32 to vector<8x256xf32>
    %37 = arith.cmpf oge, %35, %36 : vector<8x256xf32>
    %cst_13 = arith.constant 5.000000e-02 : f32
    %38 = vector.broadcast %cst_13 : f32 to vector<8x256xf32>
    %39 = arith.mulf %38, %35 : vector<8x256xf32>
    %40 = arith.select %37, %35, %39 : vector<8x256xi1>, vector<8x256xf32>
    %41 = vector.extract_strided_slice %34 {offsets = [8, 0], sizes = [16, 256], strides = [1, 1]} : vector<24x256xf32> to vector<16x256xf32>
    %42 = arith.addf %41, %1 : vector<16x256xf32>
    %cst_14 = arith.constant 0.000000e+00 : f32
    %43 = vector.broadcast %cst_14 : f32 to vector<16x256xf32>
    %44 = arith.cmpf oge, %42, %43 : vector<16x256xf32>
    %cst_15 = arith.constant 5.000000e-02 : f32
    %45 = vector.broadcast %cst_15 : f32 to vector<16x256xf32>
    %46 = arith.mulf %45, %42 : vector<16x256xf32>
    %47 = arith.select %44, %42, %46 : vector<16x256xi1>, vector<16x256xf32>
    %cst_16 = arith.constant 0.000000e+00 : f32
    %48 = vector.broadcast %cst_16 : f32 to vector<16x17xf32>
    %49 = tpu.concatenate %48, %47, %48 in 1 : vector<16x17xf32>, vector<16x256xf32>, vector<16x17xf32> -> vector<16x290xf32>
    %50 = vector.extract_strided_slice %49 {offsets = [0, 0], sizes = [16, 256], strides = [1, 1]} : vector<16x290xf32> to vector<16x256xf32>
    %51 = vector.broadcast %2 : vector<1x256xf32> to vector<16x256xf32>
    %52 = arith.mulf %50, %51 : vector<16x256xf32>
    %53 = vector.extract_strided_slice %49 {offsets = [0, 1], sizes = [16, 256], strides = [1, 1]} : vector<16x290xf32> to vector<16x256xf32>
    %54 = vector.extract_strided_slice %49 {offsets = [0, 2], sizes = [16, 256], strides = [1, 1]} : vector<16x290xf32> to vector<16x256xf32>
    %55 = vector.broadcast %3 : vector<1x256xf32> to vector<16x256xf32>
    %56 = arith.mulf %54, %55 : vector<16x256xf32>
    %57 = vector.extract_strided_slice %49 {offsets = [0, 16], sizes = [16, 256], strides = [1, 1]} : vector<16x290xf32> to vector<16x256xf32>
    %58 = vector.broadcast %2 : vector<1x256xf32> to vector<16x256xf32>
    %59 = arith.mulf %57, %58 : vector<16x256xf32>
    %60 = vector.extract_strided_slice %49 {offsets = [0, 17], sizes = [16, 256], strides = [1, 1]} : vector<16x290xf32> to vector<16x256xf32>
    %61 = vector.extract_strided_slice %49 {offsets = [0, 18], sizes = [16, 256], strides = [1, 1]} : vector<16x290xf32> to vector<16x256xf32>
    %62 = vector.broadcast %3 : vector<1x256xf32> to vector<16x256xf32>
    %63 = arith.mulf %61, %62 : vector<16x256xf32>
    %64 = vector.extract_strided_slice %49 {offsets = [0, 32], sizes = [16, 256], strides = [1, 1]} : vector<16x290xf32> to vector<16x256xf32>
    %65 = vector.broadcast %2 : vector<1x256xf32> to vector<16x256xf32>
    %66 = arith.mulf %64, %65 : vector<16x256xf32>
    %67 = vector.extract_strided_slice %49 {offsets = [0, 33], sizes = [16, 256], strides = [1, 1]} : vector<16x290xf32> to vector<16x256xf32>
    %68 = vector.extract_strided_slice %49 {offsets = [0, 34], sizes = [16, 256], strides = [1, 1]} : vector<16x290xf32> to vector<16x256xf32>
    %69 = vector.broadcast %3 : vector<1x256xf32> to vector<16x256xf32>
    %70 = arith.mulf %68, %69 : vector<16x256xf32>
    %71 = tpu.concatenate %52, %53, %56, %59, %60, %63, %66, %67, %70 in 0 : vector<16x256xf32>, vector<16x256xf32>, vector<16x256xf32>, vector<16x256xf32>, vector<16x256xf32>, vector<16x256xf32>, vector<16x256xf32>, vector<16x256xf32>, vector<16x256xf32> -> vector<144x256xf32>
    %c1_17 = arith.constant 1 : index
    %c0_18 = arith.constant 0 : index
    %c0_19 = arith.constant 0 : index
    %72 = vector.load %arg3[%c1_17, %c0_18, %c0_19] : memref<3x24x144xf32, #tpu.memory_space<vmem>>, vector<1x24x144xf32>
    %73 = vector.shape_cast %72 : vector<1x24x144xf32> to vector<24x144xf32>
    %cst_20 = arith.constant dense<0.000000e+00> : vector<24x256xf32>
    %74 = tpu.matmul %73, %71, %cst_20 {dimension_numbers = #tpu.dot_dimension_numbers<[1], [0], [0], [1], [0, 0, 1, 1], [], []>} : vector<24x144xf32>, vector<144x256xf32>, vector<24x256xf32> -> vector<24x256xf32>
    %c1_21 = arith.constant 1 : index
    %c0_22 = arith.constant 0 : index
    %c0_23 = arith.constant 0 : index
    %75 = vector.load %arg4[%c1_21, %c0_22, %c0_23] : memref<3x24x1xf32, #tpu.memory_space<vmem>>, vector<1x24x1xf32>
    %76 = vector.shape_cast %75 : vector<1x24x1xf32> to vector<24x1xf32>
    %77 = vector.broadcast %76 : vector<24x1xf32> to vector<24x256xf32>
    %78 = arith.addf %74, %77 : vector<24x256xf32>
    %79 = vector.extract_strided_slice %78 {offsets = [0, 0], sizes = [8, 256], strides = [1, 1]} : vector<24x256xf32> to vector<8x256xf32>
    %cst_24 = arith.constant 0.000000e+00 : f32
    %80 = vector.broadcast %cst_24 : f32 to vector<8x256xf32>
    %81 = arith.cmpf oge, %79, %80 : vector<8x256xf32>
    %cst_25 = arith.constant 5.000000e-02 : f32
    %82 = vector.broadcast %cst_25 : f32 to vector<8x256xf32>
    %83 = arith.mulf %82, %79 : vector<8x256xf32>
    %84 = arith.select %81, %79, %83 : vector<8x256xi1>, vector<8x256xf32>
    %85 = vector.extract_strided_slice %78 {offsets = [8, 0], sizes = [16, 256], strides = [1, 1]} : vector<24x256xf32> to vector<16x256xf32>
    %86 = arith.addf %85, %47 : vector<16x256xf32>
    %cst_26 = arith.constant 0.000000e+00 : f32
    %87 = vector.broadcast %cst_26 : f32 to vector<16x256xf32>
    %88 = arith.cmpf oge, %86, %87 : vector<16x256xf32>
    %cst_27 = arith.constant 5.000000e-02 : f32
    %89 = vector.broadcast %cst_27 : f32 to vector<16x256xf32>
    %90 = arith.mulf %89, %86 : vector<16x256xf32>
    %91 = arith.select %88, %86, %90 : vector<16x256xi1>, vector<16x256xf32>
    %cst_28 = arith.constant 0.000000e+00 : f32
    %92 = vector.broadcast %cst_28 : f32 to vector<16x17xf32>
    %93 = tpu.concatenate %92, %91, %92 in 1 : vector<16x17xf32>, vector<16x256xf32>, vector<16x17xf32> -> vector<16x290xf32>
    %94 = vector.extract_strided_slice %93 {offsets = [0, 0], sizes = [16, 256], strides = [1, 1]} : vector<16x290xf32> to vector<16x256xf32>
    %95 = vector.broadcast %2 : vector<1x256xf32> to vector<16x256xf32>
    %96 = arith.mulf %94, %95 : vector<16x256xf32>
    %97 = vector.extract_strided_slice %93 {offsets = [0, 1], sizes = [16, 256], strides = [1, 1]} : vector<16x290xf32> to vector<16x256xf32>
    %98 = vector.extract_strided_slice %93 {offsets = [0, 2], sizes = [16, 256], strides = [1, 1]} : vector<16x290xf32> to vector<16x256xf32>
    %99 = vector.broadcast %3 : vector<1x256xf32> to vector<16x256xf32>
    %100 = arith.mulf %98, %99 : vector<16x256xf32>
    %101 = vector.extract_strided_slice %93 {offsets = [0, 16], sizes = [16, 256], strides = [1, 1]} : vector<16x290xf32> to vector<16x256xf32>
    %102 = vector.broadcast %2 : vector<1x256xf32> to vector<16x256xf32>
    %103 = arith.mulf %101, %102 : vector<16x256xf32>
    %104 = vector.extract_strided_slice %93 {offsets = [0, 17], sizes = [16, 256], strides = [1, 1]} : vector<16x290xf32> to vector<16x256xf32>
    %105 = vector.extract_strided_slice %93 {offsets = [0, 18], sizes = [16, 256], strides = [1, 1]} : vector<16x290xf32> to vector<16x256xf32>
    %106 = vector.broadcast %3 : vector<1x256xf32> to vector<16x256xf32>
    %107 = arith.mulf %105, %106 : vector<16x256xf32>
    %108 = vector.extract_strided_slice %93 {offsets = [0, 32], sizes = [16, 256], strides = [1, 1]} : vector<16x290xf32> to vector<16x256xf32>
    %109 = vector.broadcast %2 : vector<1x256xf32> to vector<16x256xf32>
    %110 = arith.mulf %108, %109 : vector<16x256xf32>
    %111 = vector.extract_strided_slice %93 {offsets = [0, 33], sizes = [16, 256], strides = [1, 1]} : vector<16x290xf32> to vector<16x256xf32>
    %112 = vector.extract_strided_slice %93 {offsets = [0, 34], sizes = [16, 256], strides = [1, 1]} : vector<16x290xf32> to vector<16x256xf32>
    %113 = vector.broadcast %3 : vector<1x256xf32> to vector<16x256xf32>
    %114 = arith.mulf %112, %113 : vector<16x256xf32>
    %115 = tpu.concatenate %96, %97, %100, %103, %104, %107, %110, %111, %114 in 0 : vector<16x256xf32>, vector<16x256xf32>, vector<16x256xf32>, vector<16x256xf32>, vector<16x256xf32>, vector<16x256xf32>, vector<16x256xf32>, vector<16x256xf32>, vector<16x256xf32> -> vector<144x256xf32>
    %c2 = arith.constant 2 : index
    %c0_29 = arith.constant 0 : index
    %c0_30 = arith.constant 0 : index
    %116 = vector.load %arg3[%c2, %c0_29, %c0_30] : memref<3x24x144xf32, #tpu.memory_space<vmem>>, vector<1x24x144xf32>
    %117 = vector.shape_cast %116 : vector<1x24x144xf32> to vector<24x144xf32>
    %cst_31 = arith.constant dense<0.000000e+00> : vector<24x256xf32>
    %118 = tpu.matmul %117, %115, %cst_31 {dimension_numbers = #tpu.dot_dimension_numbers<[1], [0], [0], [1], [0, 0, 1, 1], [], []>} : vector<24x144xf32>, vector<144x256xf32>, vector<24x256xf32> -> vector<24x256xf32>
    %c2_32 = arith.constant 2 : index
    %c0_33 = arith.constant 0 : index
    %c0_34 = arith.constant 0 : index
    %119 = vector.load %arg4[%c2_32, %c0_33, %c0_34] : memref<3x24x1xf32, #tpu.memory_space<vmem>>, vector<1x24x1xf32>
    %120 = vector.shape_cast %119 : vector<1x24x1xf32> to vector<24x1xf32>
    %121 = vector.broadcast %120 : vector<24x1xf32> to vector<24x256xf32>
    %122 = arith.addf %118, %121 : vector<24x256xf32>
    %123 = vector.extract_strided_slice %122 {offsets = [0, 0], sizes = [8, 256], strides = [1, 1]} : vector<24x256xf32> to vector<8x256xf32>
    %cst_35 = arith.constant 0.000000e+00 : f32
    %124 = vector.broadcast %cst_35 : f32 to vector<8x256xf32>
    %125 = arith.cmpf oge, %123, %124 : vector<8x256xf32>
    %cst_36 = arith.constant 5.000000e-02 : f32
    %126 = vector.broadcast %cst_36 : f32 to vector<8x256xf32>
    %127 = arith.mulf %126, %123 : vector<8x256xf32>
    %128 = arith.select %125, %123, %127 : vector<8x256xi1>, vector<8x256xf32>
    %129 = vector.extract_strided_slice %122 {offsets = [8, 0], sizes = [16, 256], strides = [1, 1]} : vector<24x256xf32> to vector<16x256xf32>
    %130 = arith.addf %129, %91 : vector<16x256xf32>
    %cst_37 = arith.constant 0.000000e+00 : f32
    %131 = vector.broadcast %cst_37 : f32 to vector<16x256xf32>
    %132 = arith.cmpf oge, %130, %131 : vector<16x256xf32>
    %cst_38 = arith.constant 5.000000e-02 : f32
    %133 = vector.broadcast %cst_38 : f32 to vector<16x256xf32>
    %134 = arith.mulf %133, %130 : vector<16x256xf32>
    %135 = arith.select %132, %130, %134 : vector<16x256xi1>, vector<16x256xf32>
    %cst_39 = arith.constant 0.000000e+00 : f32
    %136 = vector.broadcast %cst_39 : f32 to vector<16x17xf32>
    %137 = tpu.concatenate %136, %135, %136 in 1 : vector<16x17xf32>, vector<16x256xf32>, vector<16x17xf32> -> vector<16x290xf32>
    %138 = vector.extract_strided_slice %137 {offsets = [0, 0], sizes = [16, 256], strides = [1, 1]} : vector<16x290xf32> to vector<16x256xf32>
    %139 = vector.broadcast %2 : vector<1x256xf32> to vector<16x256xf32>
    %140 = arith.mulf %138, %139 : vector<16x256xf32>
    %141 = vector.extract_strided_slice %137 {offsets = [0, 1], sizes = [16, 256], strides = [1, 1]} : vector<16x290xf32> to vector<16x256xf32>
    %142 = vector.extract_strided_slice %137 {offsets = [0, 2], sizes = [16, 256], strides = [1, 1]} : vector<16x290xf32> to vector<16x256xf32>
    %143 = vector.broadcast %3 : vector<1x256xf32> to vector<16x256xf32>
    %144 = arith.mulf %142, %143 : vector<16x256xf32>
    %145 = vector.extract_strided_slice %137 {offsets = [0, 16], sizes = [16, 256], strides = [1, 1]} : vector<16x290xf32> to vector<16x256xf32>
    %146 = vector.broadcast %2 : vector<1x256xf32> to vector<16x256xf32>
    %147 = arith.mulf %145, %146 : vector<16x256xf32>
    %148 = vector.extract_strided_slice %137 {offsets = [0, 17], sizes = [16, 256], strides = [1, 1]} : vector<16x290xf32> to vector<16x256xf32>
    %149 = vector.extract_strided_slice %137 {offsets = [0, 18], sizes = [16, 256], strides = [1, 1]} : vector<16x290xf32> to vector<16x256xf32>
    %150 = vector.broadcast %3 : vector<1x256xf32> to vector<16x256xf32>
    %151 = arith.mulf %149, %150 : vector<16x256xf32>
    %152 = vector.extract_strided_slice %137 {offsets = [0, 32], sizes = [16, 256], strides = [1, 1]} : vector<16x290xf32> to vector<16x256xf32>
    %153 = vector.broadcast %2 : vector<1x256xf32> to vector<16x256xf32>
    %154 = arith.mulf %152, %153 : vector<16x256xf32>
    %155 = vector.extract_strided_slice %137 {offsets = [0, 33], sizes = [16, 256], strides = [1, 1]} : vector<16x290xf32> to vector<16x256xf32>
    %156 = vector.extract_strided_slice %137 {offsets = [0, 34], sizes = [16, 256], strides = [1, 1]} : vector<16x290xf32> to vector<16x256xf32>
    %157 = vector.broadcast %3 : vector<1x256xf32> to vector<16x256xf32>
    %158 = arith.mulf %156, %157 : vector<16x256xf32>
    %159 = tpu.concatenate %140, %141, %144, %147, %148, %151, %154, %155, %158 in 0 : vector<16x256xf32>, vector<16x256xf32>, vector<16x256xf32>, vector<16x256xf32>, vector<16x256xf32>, vector<16x256xf32>, vector<16x256xf32>, vector<16x256xf32>, vector<16x256xf32> -> vector<144x256xf32>
    %c0_40 = arith.constant 0 : index
    %c0_41 = arith.constant 0 : index
    %160 = vector.load %arg5[%c0_40, %c0_41] : memref<8x144xf32, #tpu.memory_space<vmem>>, vector<8x144xf32>
    %cst_42 = arith.constant dense<0.000000e+00> : vector<8x256xf32>
    %161 = tpu.matmul %160, %159, %cst_42 {dimension_numbers = #tpu.dot_dimension_numbers<[1], [0], [0], [1], [0, 0, 1, 1], [], []>} : vector<8x144xf32>, vector<144x256xf32>, vector<8x256xf32> -> vector<8x256xf32>
    %c0_43 = arith.constant 0 : index
    %c0_44 = arith.constant 0 : index
    %162 = vector.load %arg6[%c0_43, %c0_44] : memref<8x1xf32, #tpu.memory_space<vmem>>, vector<8x1xf32>
    %163 = vector.broadcast %162 : vector<8x1xf32> to vector<8x256xf32>
    %164 = arith.addf %161, %163 : vector<8x256xf32>
    %cst_45 = arith.constant 0.000000e+00 : f32
    %165 = vector.broadcast %cst_45 : f32 to vector<8x256xf32>
    %166 = arith.cmpf oge, %164, %165 : vector<8x256xf32>
    %cst_46 = arith.constant 5.000000e-02 : f32
    %167 = vector.broadcast %cst_46 : f32 to vector<8x256xf32>
    %168 = arith.mulf %167, %164 : vector<8x256xf32>
    %169 = arith.select %166, %164, %168 : vector<8x256xi1>, vector<8x256xf32>
    %170 = tpu.concatenate %40, %84, %128, %169 in 0 : vector<8x256xf32>, vector<8x256xf32>, vector<8x256xf32>, vector<8x256xf32> -> vector<32x256xf32>
    %c0_47 = arith.constant 0 : index
    %c0_48 = arith.constant 0 : index
    %171 = vector.load %arg7[%c0_47, %c0_48] : memref<16x32xf32, #tpu.memory_space<vmem>>, vector<16x32xf32>
    %cst_49 = arith.constant dense<0.000000e+00> : vector<16x256xf32>
    %172 = tpu.matmul %171, %170, %cst_49 {dimension_numbers = #tpu.dot_dimension_numbers<[1], [0], [0], [1], [0, 0, 1, 1], [], []>} : vector<16x32xf32>, vector<32x256xf32>, vector<16x256xf32> -> vector<16x256xf32>
    %c0_50 = arith.constant 0 : index
    %c0_51 = arith.constant 0 : index
    %173 = vector.load %arg8[%c0_50, %c0_51] : memref<16x1xf32, #tpu.memory_space<vmem>>, vector<16x1xf32>
    %174 = vector.broadcast %173 : vector<16x1xf32> to vector<16x256xf32>
    %175 = arith.addf %172, %174 : vector<16x256xf32>
    %cst_52 = arith.constant 0.000000e+00 : f32
    %176 = vector.broadcast %cst_52 : f32 to vector<16x256xf32>
    %177 = arith.cmpf oge, %175, %176 : vector<16x256xf32>
    %cst_53 = arith.constant 5.000000e-02 : f32
    %178 = vector.broadcast %cst_53 : f32 to vector<16x256xf32>
    %179 = arith.mulf %178, %175 : vector<16x256xf32>
    %180 = arith.select %177, %175, %179 : vector<16x256xi1>, vector<16x256xf32>
    %cst_54 = arith.constant dense<0.000000e+00> : vector<16xf32>
    %181 = vector.multi_reduction <add>, %180, %cst_54 [1] : vector<16x256xf32> to vector<16xf32>
    %182 = vector.shape_cast %181 : vector<16xf32> to vector<16x1xf32>
    %cst_55 = arith.constant 3.906250e-03 : f32
    %183 = vector.broadcast %cst_55 : f32 to vector<16x1xf32>
    %184 = arith.mulf %182, %183 : vector<16x1xf32>
    %185 = vector.broadcast %184 : vector<16x1xf32> to vector<16x256xf32>
    %186 = arith.subf %180, %185 : vector<16x256xf32>
    %187 = arith.mulf %186, %186 : vector<16x256xf32>
    %cst_56 = arith.constant dense<0.000000e+00> : vector<16xf32>
    %188 = vector.multi_reduction <add>, %187, %cst_56 [1] : vector<16x256xf32> to vector<16xf32>
    %189 = vector.shape_cast %188 : vector<16xf32> to vector<16x1xf32>
    %cst_57 = arith.constant 3.906250e-03 : f32
    %190 = vector.broadcast %cst_57 : f32 to vector<16x1xf32>
    %191 = arith.mulf %189, %190 : vector<16x1xf32>
    %192 = math.sqrt %191 : vector<16x1xf32>
    %193 = arith.addf %192, %184 : vector<16x1xf32>
    %c0_58 = arith.constant 0 : index
    %c0_59 = arith.constant 0 : index
    %194 = vector.load %arg9[%c0_58, %c0_59] : memref<16x2xf32, #tpu.memory_space<vmem>>, vector<16x2xf32>
    %195 = vector.broadcast %193 : vector<16x1xf32> to vector<16x2xf32>
    %196 = arith.mulf %194, %195 : vector<16x2xf32>
    %cst_60 = arith.constant dense<0.000000e+00> : vector<2xf32>
    %197 = vector.multi_reduction <add>, %196, %cst_60 [0] : vector<16x2xf32> to vector<2xf32>
    %198 = vector.shape_cast %197 : vector<2xf32> to vector<1x2xf32>
    %c0_61 = arith.constant 0 : index
    %c0_62 = arith.constant 0 : index
    %199 = vector.load %arg10[%c0_61, %c0_62] : memref<1x2xf32, #tpu.memory_space<vmem>>, vector<1x2xf32>
    %200 = arith.addf %198, %199 : vector<1x2xf32>
    %cst_63 = arith.constant 0.000000e+00 : f32
    %201 = vector.broadcast %cst_63 : f32 to vector<1x2xf32>
    %202 = arith.cmpf oge, %200, %201 : vector<1x2xf32>
    %cst_64 = arith.constant 5.000000e-02 : f32
    %203 = vector.broadcast %cst_64 : f32 to vector<1x2xf32>
    %204 = arith.mulf %203, %200 : vector<1x2xf32>
    %205 = arith.select %202, %200, %204 : vector<1x2xi1>, vector<1x2xf32>
    %c0_65 = arith.constant 0 : index
    %c0_66 = arith.constant 0 : index
    %206 = vector.load %arg11[%c0_65, %c0_66] : memref<16x2xf32, #tpu.memory_space<vmem>>, vector<16x2xf32>
    %207 = vector.broadcast %205 : vector<1x2xf32> to vector<16x2xf32>
    %208 = arith.mulf %206, %207 : vector<16x2xf32>
    %cst_67 = arith.constant dense<0.000000e+00> : vector<16xf32>
    %209 = vector.multi_reduction <add>, %208, %cst_67 [1] : vector<16x2xf32> to vector<16xf32>
    %210 = vector.shape_cast %209 : vector<16xf32> to vector<16x1xf32>
    %c0_68 = arith.constant 0 : index
    %c0_69 = arith.constant 0 : index
    %211 = vector.load %arg12[%c0_68, %c0_69] : memref<16x1xf32, #tpu.memory_space<vmem>>, vector<16x1xf32>
    %212 = arith.addf %210, %211 : vector<16x1xf32>
    %cst_70 = arith.constant 0.000000e+00 : f32
    %213 = vector.broadcast %cst_70 : f32 to vector<16x1xf32>
    %214 = arith.subf %213, %212 : vector<16x1xf32>
    %215 = math.exp %214 : vector<16x1xf32>
    %cst_71 = arith.constant 1.000000e+00 : f32
    %216 = vector.broadcast %cst_71 : f32 to vector<16x1xf32>
    %217 = arith.addf %216, %215 : vector<16x1xf32>
    %cst_72 = arith.constant 1.000000e+00 : f32
    %218 = vector.broadcast %cst_72 : f32 to vector<16x1xf32>
    %219 = arith.divf %218, %217 : vector<16x1xf32>
    %220 = vector.broadcast %219 : vector<16x1xf32> to vector<16x256xf32>
    %221 = arith.mulf %180, %220 : vector<16x256xf32>
    %222 = arith.addf %221, %1 : vector<16x256xf32>
    %c0_73 = arith.constant 0 : index
    %c0_74 = arith.constant 0 : index
    %c0_75 = arith.constant 0 : index
    %223 = vector.load %arg13[%c0_73, %c0_74, %c0_75] : memref<1x16x256xf32, #tpu.memory_space<vmem>>, vector<1x16x256xf32>
    %224 = vector.shape_cast %223 : vector<1x16x256xf32> to vector<16x256xf32>
    %225 = vector.shape_cast %222 : vector<16x256xf32> to vector<1x16x256xf32>
    tpu.vector_store %arg13[%c0_73, %c0_74, %c0_75], %225 {strides = array<i32>} : memref<1x16x256xf32, #tpu.memory_space<vmem>>, vector<1x16x256xf32>,
    return
  }
  func.func @transform_0(%arg0: i32) -> (i32, i32, i32) {
    %c0_i32 = arith.constant 0 : i32
    %c0_i32_0 = arith.constant 0 : i32
    %c0_i32_1 = arith.constant 0 : i32
    return %arg0, %c0_i32, %c0_i32_0 : i32, i32, i32
  }
  func.func @transform_1(%arg0: i32) -> (i32, i32) {
    %c0_i32 = arith.constant 0 : i32
    %c0_i32_0 = arith.constant 0 : i32
    %c0_i32_1 = arith.constant 0 : i32
    return %c0_i32, %c0_i32_0 : i32, i32
  }
  func.func @transform_2(%arg0: i32) -> (i32, i32, i32) {
    %c0_i32 = arith.constant 0 : i32
    %c0_i32_0 = arith.constant 0 : i32
    %c0_i32_1 = arith.constant 0 : i32
    %c0_i32_2 = arith.constant 0 : i32
    return %c0_i32, %c0_i32_0, %c0_i32_1 : i32, i32, i32
  }
  func.func @transform_3(%arg0: i32) -> (i32, i32, i32) {
    %c0_i32 = arith.constant 0 : i32
    %c0_i32_0 = arith.constant 0 : i32
    %c0_i32_1 = arith.constant 0 : i32
    %c0_i32_2 = arith.constant 0 : i32
    return %c0_i32, %c0_i32_0, %c0_i32_1 : i32, i32, i32
  }
  func.func @transform_4(%arg0: i32) -> (i32, i32) {
    %c0_i32 = arith.constant 0 : i32
    %c0_i32_0 = arith.constant 0 : i32
    %c0_i32_1 = arith.constant 0 : i32
    return %c0_i32, %c0_i32_0 : i32, i32
  }
  func.func @transform_5(%arg0: i32) -> (i32, i32) {
    %c0_i32 = arith.constant 0 : i32
    %c0_i32_0 = arith.constant 0 : i32
    %c0_i32_1 = arith.constant 0 : i32
    return %c0_i32, %c0_i32_0 : i32, i32
  }
  func.func @transform_6(%arg0: i32) -> (i32, i32) {
    %c0_i32 = arith.constant 0 : i32
    %c0_i32_0 = arith.constant 0 : i32
    %c0_i32_1 = arith.constant 0 : i32
    return %c0_i32, %c0_i32_0 : i32, i32
  }
  func.func @transform_7(%arg0: i32) -> (i32, i32) {
    %c0_i32 = arith.constant 0 : i32
    %c0_i32_0 = arith.constant 0 : i32
    %c0_i32_1 = arith.constant 0 : i32
    return %c0_i32, %c0_i32_0 : i32, i32
  }
  func.func @transform_8(%arg0: i32) -> (i32, i32) {
    %c0_i32 = arith.constant 0 : i32
    %c0_i32_0 = arith.constant 0 : i32
    %c0_i32_1 = arith.constant 0 : i32
    return %c0_i32, %c0_i32_0 : i32, i32
  }
  func.func @transform_9(%arg0: i32) -> (i32, i32) {
    %c0_i32 = arith.constant 0 : i32
    %c0_i32_0 = arith.constant 0 : i32
    %c0_i32_1 = arith.constant 0 : i32
    return %c0_i32, %c0_i32_0 : i32, i32
  }
  func.func @transform_10(%arg0: i32) -> (i32, i32) {
    %c0_i32 = arith.constant 0 : i32
    %c0_i32_0 = arith.constant 0 : i32
    %c0_i32_1 = arith.constant 0 : i32
    return %c0_i32, %c0_i32_0 : i32, i32
  }
  func.func @transform_11(%arg0: i32) -> (i32, i32) {
    %c0_i32 = arith.constant 0 : i32
    %c0_i32_0 = arith.constant 0 : i32
    %c0_i32_1 = arith.constant 0 : i32
    return %c0_i32, %c0_i32_0 : i32, i32
  }
  func.func @transform_12(%arg0: i32) -> (i32, i32, i32) {
    %c0_i32 = arith.constant 0 : i32
    %c0_i32_0 = arith.constant 0 : i32
    %c0_i32_1 = arith.constant 0 : i32
    return %arg0, %c0_i32, %c0_i32_0 : i32, i32, i32
  }
}

</mosaic_0001>

<llo_original>
// kernel: main_block_forward.1
$region0: #{main_block_forward.1}
  #allocation0 [shape = 'u32[]', space=smem, size = 0x4, offset = 0x4, fixed_abs, tag = 'smem constant byte address 0x4 - core index']
  #allocation1 [shape = 'u32[72,128]{1,0:T(1,128)}', space=vmem, size = 0x9000, scoped, tag = 'internal scratch']
  %s0 = inlined_call_operand.vmem [shape: f32[2,16,256], index: 0, kind: input, shape index: {}]
  %s1 = inlined_call_operand.vmem [shape: f32[2,256], index: 1, kind: input, shape index: {}]
  %s2 = inlined_call_operand.vmem [shape: f32[3,24,144], index: 2, kind: input, shape index: {}]
  %s3 = inlined_call_operand.vmem [shape: f32[3,24,1], index: 3, kind: input, shape index: {}]
  %s4 = inlined_call_operand.vmem [shape: f32[8,144], index: 4, kind: input, shape index: {}]
  %s5 = inlined_call_operand.vmem [shape: f32[8,1], index: 5, kind: input, shape index: {}]
  %s6 = inlined_call_operand.vmem [shape: f32[16,32], index: 6, kind: input, shape index: {}]
  %s7 = inlined_call_operand.vmem [shape: f32[16,1], index: 7, kind: input, shape index: {}]
  %s8 = inlined_call_operand.vmem [shape: f32[16,2], index: 8, kind: input, shape index: {}]
  %s9 = inlined_call_operand.vmem [shape: f32[1,2], index: 9, kind: input, shape index: {}]
  %s10 = inlined_call_operand.vmem [shape: f32[16,2], index: 10, kind: input, shape index: {}]
  %s11 = inlined_call_operand.vmem [shape: f32[16,1], index: 11, kind: input, shape index: {}]
  %s12 = inlined_call_operand.vmem [shape: f32[2,16,256], index: 12, kind: output, shape index: {}]
  %s13 = sld [smem:[#allocation0]]
  $region81: #{main_block_forward.1} parent=0
    _
  %s15 = ssub.s32 1, %s13
  %s16 = scalar_select 0, %s15, %s13
  loop: start=0, step=1, limit=4
  $region2: #{main_block_forward.1} parent=0 // loop_pre_header
    _
  $region3: #{main_block_forward.1} parent=0 // loop_header
    %s18 = sphi 0, %s22
    %p19 = scmp.ge.s32.totalorder %s18, 4
    %s28 = sphi 0, %s30
    %s31 = sphi 0, %s28
    %s32 = sphi 0, %s31
    %s48 = sphi 0, %s32
    %s52 = sphi 0, %s52
    %s54 = sphi 0, %s52
    %s55 = sphi 0, %s54
    %s69 = sphi 0, %s55
    %s73 = sphi 0, %s73
    %s75 = sphi 0, %s73
    %s76 = sphi 0, %s75
    %s90 = sphi 0, %s76
    %s94 = sphi 0, %s94
    %s96 = sphi 0, %s94
    %s97 = sphi 0, %s96
    %s111 = sphi 0, %s97
    %s115 = sphi 0, %s115
    %s117 = sphi 0, %s115
    %s118 = sphi 0, %s117
    %s132 = sphi 0, %s118
    %s136 = sphi 0, %s136
    %s138 = sphi 0, %s136
    %s139 = sphi 0, %s138
    %s153 = sphi 0, %s139
    %s157 = sphi 0, %s157
    %s159 = sphi 0, %s157
    %s160 = sphi 0, %s159
    %s174 = sphi 0, %s160
    %s178 = sphi 0, %s178
    %s180 = sphi 0, %s178
    %s181 = sphi 0, %s180
    %s195 = sphi 0, %s181
    %s199 = sphi 0, %s199
    %s201 = sphi 0, %s199
    %s202 = sphi 0, %s201
    %s216 = sphi 0, %s202
    %s220 = sphi 0, %s220
    %s222 = sphi 0, %s220
    %s223 = sphi 0, %s222
    %s237 = sphi 0, %s223
    %s241 = sphi 0, %s241
    %s243 = sphi 0, %s241
    %s244 = sphi 0, %s243
    %s258 = sphi 0, %s244
    %s262 = sphi 0, %s262
    %s264 = sphi 0, %s262
    %s265 = sphi 0, %s264
    %s279 = sphi 0, %s265
    %s285 = sphi 0, %s287
    %s288 = sphi 0, %s285
    %s289 = sphi 0, %s288
    %s305 = sphi 0, %s289
  $region4: #{main_block_forward.1} parent=0 // loop_header_branch
    %21 = sbr.rel (%p19) target = $region8
  $region5: #{main_block_forward.1} parent=0 // loop_body
    %s23 = ssub.s32 %s18, 1
    %s24 = ssub.s32 %s18, 2
    %s25 = sadd.s32 %s18, 1
    %s26 = ssub.s32 %s18, %s25
    %p27 = scmp.eq.s32.totalorder %s26, 0
    %s29 = sadd.s32 %s28, 1
    %s30 = scalar_select %p27, %s28, %s29
    %p33 = pneg %p27
    %p34 = scmp.eq.s32.totalorder %s18, 1
    %p35 = por %p33, %p34
    %p36 = scmp.ne.s32.totalorder %s28, %s31
    %p37 = scmp.eq.s32.totalorder %s18, 0
    %p38 = por %p36, %p37
    %p39 = scmp.ne.s32.totalorder %s28, %s31
    %p40 = scmp.eq.s32.totalorder %s23, 1
    %p41 = por %p39, %p40
    %p42 = scmp.ne.s32.totalorder %s31, %s32
    %p43 = scmp.eq.s32.totalorder %s23, 0
    %p44 = por %p42, %p43
    %p45 = scmp.ne.s32.totalorder %s31, %s32
    %p46 = scmp.eq.s32.totalorder %s24, 1
    %p47 = por %p45, %p46
    %p49 = scmp.ne.s32.totalorder %s32, %s48
    %p50 = scmp.eq.s32.totalorder %s24, 0
    %p51 = por %p49, %p50
    %s53 = sadd.s32 %s52, 1
    %p56 = scmp.eq.s32.totalorder %s18, 1
    %p57 = scmp.ne.s32.totalorder %s52, %s54
    %p58 = scmp.eq.s32.totalorder %s18, 0
    %p59 = por %p57, %p58
    %p60 = scmp.ne.s32.totalorder %s52, %s54
    %p61 = scmp.eq.s32.totalorder %s23, 1
    %p62 = por %p60, %p61
    %p63 = scmp.ne.s32.totalorder %s54, %s55
    %p64 = scmp.eq.s32.totalorder %s23, 0
    %p65 = por %p63, %p64
    %p66 = scmp.ne.s32.totalorder %s54, %s55
    %p67 = scmp.eq.s32.totalorder %s24, 1
    %p68 = por %p66, %p67
    %p70 = scmp.ne.s32.totalorder %s55, %s69
    %p71 = scmp.eq.s32.totalorder %s24, 0
    %p72 = por %p70, %p71
    %s74 = sadd.s32 %s73, 1
    %p77 = scmp.eq.s32.totalorder %s18, 1
    %p78 = scmp.ne.s32.totalorder %s73, %s75
    %p79 = scmp.eq.s32.totalorder %s18, 0
    %p80 = por %p78, %p79
    %p81 = scmp.ne.s32.totalorder %s73, %s75
    %p82 = scmp.eq.s32.totalorder %s23, 1
    %p83 = por %p81, %p82
    %p84 = scmp.ne.s32.totalorder %s75, %s76
    %p85 = scmp.eq.s32.totalorder %s23, 0
    %p86 = por %p84, %p85
    %p87 = scmp.ne.s32.totalorder %s75, %s76
    %p88 = scmp.eq.s32.totalorder %s24, 1
    %p89 = por %p87, %p88
    %p91 = scmp.ne.s32.totalorder %s76, %s90
    %p92 = scmp.eq.s32.totalorder %s24, 0
    %p93 = por %p91, %p92
    %s95 = sadd.s32 %s94, 1
    %p98 = scmp.eq.s32.totalorder %s18, 1
    %p99 = scmp.ne.s32.totalorder %s94, %s96
    %p100 = scmp.eq.s32.totalorder %s18, 0
    %p101 = por %p99, %p100
    %p102 = scmp.ne.s32.totalorder %s94, %s96
    %p103 = scmp.eq.s32.totalorder %s23, 1
    %p104 = por %p102, %p103
    %p105 = scmp.ne.s32.totalorder %s96, %s97
    %p106 = scmp.eq.s32.totalorder %s23, 0
    %p107 = por %p105, %p106
    %p108 = scmp.ne.s32.totalorder %s96, %s97
    %p109 = scmp.eq.s32.totalorder %s24, 1
    %p110 = por %p108, %p109
    %p112 = scmp.ne.s32.totalorder %s97, %s111
    %p113 = scmp.eq.s32.totalorder %s24, 0
    %p114 = por %p112, %p113
    %s116 = sadd.s32 %s115, 1
    %p119 = scmp.eq.s32.totalorder %s18, 1
    %p120 = scmp.ne.s32.totalorder %s115, %s117
    %p121 = scmp.eq.s32.totalorder %s18, 0
    %p122 = por %p120, %p121
    %p123 = scmp.ne.s32.totalorder %s115, %s117
    %p124 = scmp.eq.s32.totalorder %s23, 1
    %p125 = por %p123, %p124
    %p126 = scmp.ne.s32.totalorder %s117, %s118
    %p127 = scmp.eq.s32.totalorder %s23, 0
    %p128 = por %p126, %p127
    %p129 = scmp.ne.s32.totalorder %s117, %s118
    %p130 = scmp.eq.s32.totalorder %s24, 1
    %p131 = por %p129, %p130
    %p133 = scmp.ne.s32.totalorder %s118, %s132
    %p134 = scmp.eq.s32.totalorder %s24, 0
    %p135 = por %p133, %p134
    %s137 = sadd.s32 %s136, 1
    %p140 = scmp.eq.s32.totalorder %s18, 1
    %p141 = scmp.ne.s32.totalorder %s136, %s138
    %p142 = scmp.eq.s32.totalorder %s18, 0
    %p143 = por %p141, %p142
    %p144 = scmp.ne.s32.totalorder %s136, %s138
    %p145 = scmp.eq.s32.totalorder %s23, 1
    %p146 = por %p144, %p145
    %p147 = scmp.ne.s32.totalorder %s138, %s139
    %p148 = scmp.eq.s32.totalorder %s23, 0
    %p149 = por %p147, %p148
    %p150 = scmp.ne.s32.totalorder %s138, %s139
    %p151 = scmp.eq.s32.totalorder %s24, 1
    %p152 = por %p150, %p151
    %p154 = scmp.ne.s32.totalorder %s139, %s153
    %p155 = scmp.eq.s32.totalorder %s24, 0
    %p156 = por %p154, %p155
    %s158 = sadd.s32 %s157, 1
    %p161 = scmp.eq.s32.totalorder %s18, 1
    %p162 = scmp.ne.s32.totalorder %s157, %s159
    %p163 = scmp.eq.s32.totalorder %s18, 0
    %p164 = por %p162, %p163
    %p165 = scmp.ne.s32.totalorder %s157, %s159
    %p166 = scmp.eq.s32.totalorder %s23, 1
    %p167 = por %p165, %p166
    %p168 = scmp.ne.s32.totalorder %s159, %s160
    %p169 = scmp.eq.s32.totalorder %s23, 0
    %p170 = por %p168, %p169
    %p171 = scmp.ne.s32.totalorder %s159, %s160
    %p172 = scmp.eq.s32.totalorder %s24, 1
    %p173 = por %p171, %p172
    %p175 = scmp.ne.s32.totalorder %s160, %s174
    %p176 = scmp.eq.s32.totalorder %s24, 0
    %p177 = por %p175, %p176
    %s179 = sadd.s32 %s178, 1
    %p182 = scmp.eq.s32.totalorder %s18, 1
    %p183 = scmp.ne.s32.totalorder %s178, %s180
    %p184 = scmp.eq.s32.totalorder %s18, 0
    %p185 = por %p183, %p184
    %p186 = scmp.ne.s32.totalorder %s178, %s180
    %p187 = scmp.eq.s32.totalorder %s23, 1
    %p188 = por %p186, %p187
    %p189 = scmp.ne.s32.totalorder %s180, %s181
    %p190 = scmp.eq.s32.totalorder %s23, 0
    %p191 = por %p189, %p190
    %p192 = scmp.ne.s32.totalorder %s180, %s181
    %p193 = scmp.eq.s32.totalorder %s24, 1
    %p194 = por %p192, %p193
    %p196 = scmp.ne.s32.totalorder %s181, %s195
    %p197 = scmp.eq.s32.totalorder %s24, 0
    %p198 = por %p196, %p197
    %s200 = sadd.s32 %s199, 1
    %p203 = scmp.eq.s32.totalorder %s18, 1
    %p204 = scmp.ne.s32.totalorder %s199, %s201
    %p205 = scmp.eq.s32.totalorder %s18, 0
    %p206 = por %p204, %p205
    %p207 = scmp.ne.s32.totalorder %s199, %s201
    %p208 = scmp.eq.s32.totalorder %s23, 1
    %p209 = por %p207, %p208
    %p210 = scmp.ne.s32.totalorder %s201, %s202
    %p211 = scmp.eq.s32.totalorder %s23, 0
    %p212 = por %p210, %p211
    %p213 = scmp.ne.s32.totalorder %s201, %s202
    %p214 = scmp.eq.s32.totalorder %s24, 1
    %p215 = por %p213, %p214
    %p217 = scmp.ne.s32.totalorder %s202, %s216
    %p218 = scmp.eq.s32.totalorder %s24, 0
    %p219 = por %p217, %p218
    %s221 = sadd.s32 %s220, 1
    %p224 = scmp.eq.s32.totalorder %s18, 1
    %p225 = scmp.ne.s32.totalorder %s220, %s222
    %p226 = scmp.eq.s32.totalorder %s18, 0
    %p227 = por %p225, %p226
    %p228 = scmp.ne.s32.totalorder %s220, %s222
    %p229 = scmp.eq.s32.totalorder %s23, 1
    %p230 = por %p228, %p229
    %p231 = scmp.ne.s32.totalorder %s222, %s223
    %p232 = scmp.eq.s32.totalorder %s23, 0
    %p233 = por %p231, %p232
    %p234 = scmp.ne.s32.totalorder %s222, %s223
    %p235 = scmp.eq.s32.totalorder %s24, 1
    %p236 = por %p234, %p235
    %p238 = scmp.ne.s32.totalorder %s223, %s237
    %p239 = scmp.eq.s32.totalorder %s24, 0
    %p240 = por %p238, %p239
    %s242 = sadd.s32 %s241, 1
    %p245 = scmp.eq.s32.totalorder %s18, 1
    %p246 = scmp.ne.s32.totalorder %s241, %s243
    %p247 = scmp.eq.s32.totalorder %s18, 0
    %p248 = por %p246, %p247
    %p249 = scmp.ne.s32.totalorder %s241, %s243
    %p250 = scmp.eq.s32.totalorder %s23, 1
    %p251 = por %p249, %p250
    %p252 = scmp.ne.s32.totalorder %s243, %s244
    %p253 = scmp.eq.s32.totalorder %s23, 0
    %p254 = por %p252, %p253
    %p255 = scmp.ne.s32.totalorder %s243, %s244
    %p256 = scmp.eq.s32.totalorder %s24, 1
    %p257 = por %p255, %p256
    %p259 = scmp.ne.s32.totalorder %s244, %s258
    %p260 = scmp.eq.s32.totalorder %s24, 0
    %p261 = por %p259, %p260
    %s263 = sadd.s32 %s262, 1
    %p266 = scmp.eq.s32.totalorder %s18, 1
    %p267 = scmp.ne.s32.totalorder %s262, %s264
    %p268 = scmp.eq.s32.totalorder %s18, 0
    %p269 = por %p267, %p268
    %p270 = scmp.ne.s32.totalorder %s262, %s264
    %p271 = scmp.eq.s32.totalorder %s23, 1
    %p272 = por %p270, %p271
    %p273 = scmp.ne.s32.totalorder %s264, %s265
    %p274 = scmp.eq.s32.totalorder %s23, 0
    %p275 = por %p273, %p274
    %p276 = scmp.ne.s32.totalorder %s264, %s265
    %p277 = scmp.eq.s32.totalorder %s24, 1
    %p278 = por %p276, %p277
    %p280 = scmp.ne.s32.totalorder %s265, %s279
    %p281 = scmp.eq.s32.totalorder %s24, 0
    %p282 = por %p280, %p281
    %s283 = ssub.s32 %s18, %s25
    %p284 = scmp.eq.s32.totalorder %s283, 0
    %s286 = sadd.s32 %s285, 1
    %s287 = scalar_select %p284, %s285, %s286
    %p290 = pneg %p284
    %p291 = scmp.eq.s32.totalorder %s18, 1
    %p292 = por %p290, %p291
    %p293 = scmp.ne.s32.totalorder %s285, %s288
    %p294 = scmp.eq.s32.totalorder %s18, 0
    %p295 = por %p293, %p294
    %p296 = scmp.ne.s32.totalorder %s285, %s288
    %p297 = scmp.eq.s32.totalorder %s23, 1
    %p298 = por %p296, %p297
    %p299 = scmp.ne.s32.totalorder %s288, %s289
    %p300 = scmp.eq.s32.totalorder %s23, 0
    %p301 = por %p299, %p300
    %p302 = scmp.ne.s32.totalorder %s288, %s289
    %p303 = scmp.eq.s32.totalorder %s24, 1
    %p304 = por %p302, %p303
    %p306 = scmp.ne.s32.totalorder %s289, %s305
    %p307 = scmp.eq.s32.totalorder %s24, 0
    %p308 = por %p306, %p307
    %p309 = scmp.le.s32.totalorder 1, %s18
    %p310 = scmp.lt.s32.totalorder %s18, 3
    %p311 = pnand %p309, %p310
    %p312 = pneg %p311
    // Predicated region
    $region9: #{main_block_forward.1} parent=5 // pred_check
      _
    $region10: #{main_block_forward.1} parent=5 // pred_check_branch
      %314 = sbr.rel (%p311) target = $region12
    $region11: #{main_block_forward.1} parent=5 // pred_region
      %s315 = ssub.s32 %s18, 1
      // Predicated region
      $region13: #{main_block_forward.1} parent=11 // pred_check
        %p316 = pneg %p65
      $region14: #{main_block_forward.1} parent=11 // pred_check_branch
        %318 = sbr.rel (%p316) target = $region16
      $region15: #{main_block_forward.1} parent=11 // pred_region
        _
      $region16: #{main_block_forward.1} parent=11 // pred_fallthru
        _
      // Predicated region
      $region17: #{main_block_forward.1} parent=11 // pred_check
        %p319 = pneg %p86
      $region18: #{main_block_forward.1} parent=11 // pred_check_branch
        %321 = sbr.rel (%p319) target = $region20
      $region19: #{main_block_forward.1} parent=11 // pred_region
        _
      $region20: #{main_block_forward.1} parent=11 // pred_fallthru
        _
      // Predicated region
      $region21: #{main_block_forward.1} parent=11 // pred_check
        %p322 = pneg %p107
      $region22: #{main_block_forward.1} parent=11 // pred_check_branch
        %324 = sbr.rel (%p322) target = $region24
      $region23: #{main_block_forward.1} parent=11 // pred_region
        _
      $region24: #{main_block_forward.1} parent=11 // pred_fallthru
        _
      // Predicated region
      $region25: #{main_block_forward.1} parent=11 // pred_check
        %p325 = pneg %p128
      $region26: #{main_block_forward.1} parent=11 // pred_check_branch
        %327 = sbr.rel (%p325) target = $region28
      $region27: #{main_block_forward.1} parent=11 // pred_region
        _
      $region28: #{main_block_forward.1} parent=11 // pred_fallthru
        _
      // Predicated region
      $region29: #{main_block_forward.1} parent=11 // pred_check
        %p328 = pneg %p149
      $region30: #{main_block_forward.1} parent=11 // pred_check_branch
        %330 = sbr.rel (%p328) target = $region32
      $region31: #{main_block_forward.1} parent=11 // pred_region
        _
      $region32: #{main_block_forward.1} parent=11 // pred_fallthru
        _
      // Predicated region
      $region33: #{main_block_forward.1} parent=11 // pred_check
        %p331 = pneg %p170
      $region34: #{main_block_forward.1} parent=11 // pred_check_branch
        %333 = sbr.rel (%p331) target = $region36
      $region35: #{main_block_forward.1} parent=11 // pred_region
        _
      $region36: #{main_block_forward.1} parent=11 // pred_fallthru
        _
      // Predicated region
      $region37: #{main_block_forward.1} parent=11 // pred_check
        %p334 = pneg %p191
      $region38: #{main_block_forward.1} parent=11 // pred_check_branch
        %336 = sbr.rel (%p334) target = $region40
      $region39: #{main_block_forward.1} parent=11 // pred_region
        _
      $region40: #{main_block_forward.1} parent=11 // pred_fallthru
        _
      // Predicated region
      $region41: #{main_block_forward.1} parent=11 // pred_check
        %p337 = pneg %p212
      $region42: #{main_block_forward.1} parent=11 // pred_check_branch
        %339 = sbr.rel (%p337) target = $region44
      $region43: #{main_block_forward.1} parent=11 // pred_region
        _
      $region44: #{main_block_forward.1} parent=11 // pred_fallthru
        _
      // Predicated region
      $region45: #{main_block_forward.1} parent=11 // pred_check
        %p340 = pneg %p233
      $region46: #{main_block_forward.1} parent=11 // pred_check_branch
        %342 = sbr.rel (%p340) target = $region48
      $region47: #{main_block_forward.1} parent=11 // pred_region
        _
      $region48: #{main_block_forward.1} parent=11 // pred_fallthru
        _
      // Predicated region
      $region49: #{main_block_forward.1} parent=11 // pred_check
        %p343 = pneg %p254
      $region50: #{main_block_forward.1} parent=11 // pred_check_branch
        %345 = sbr.rel (%p343) target = $region52
      $region51: #{main_block_forward.1} parent=11 // pred_region
        _
      $region52: #{main_block_forward.1} parent=11 // pred_fallthru
        _
      // Predicated region
      $region53: #{main_block_forward.1} parent=11 // pred_check
        %p346 = pneg %p275
      $region54: #{main_block_forward.1} parent=11 // pred_check_branch
        %348 = sbr.rel (%p346) target = $region56
      $region55: #{main_block_forward.1} parent=11 // pred_region
        _
      $region56: #{main_block_forward.1} parent=11 // pred_fallthru
        _
    $region12: #{main_block_forward.1} parent=5 // pred_fallthru
      _
    %p349 = scmp.lt.s32.totalorder %s18, 2
    // Predicated region
    $region57: #{main_block_forward.1} parent=5 // pred_check
      %p350 = pneg %p349
    $region58: #{main_block_forward.1} parent=5 // pred_check_branch
      %352 = sbr.rel (%p350) target = $region60
    $region59: #{main_block_forward.1} parent=5 // pred_region
      // Predicated region
      $region61: #{main_block_forward.1} parent=59 // pred_check
        %p353 = pneg %p38
      $region62: #{main_block_forward.1} parent=59 // pred_check_branch
        %355 = sbr.rel (%p353) target = $region64
      $region63: #{main_block_forward.1} parent=59 // pred_region
        %p356 = scmp.lt.s32.totalorder %s18, 1
        %s357 = scalar_select %p356, %s18, 1
        %s358 = smul.addr %s357, 4
        %s359 = smul.addr %s358, 8
        %s360 = scalar_lea.vmem %s0, %s359
      $region64: #{main_block_forward.1} parent=59 // pred_fallthru
        _
    $region60: #{main_block_forward.1} parent=5 // pred_fallthru
      _
    %p361 = scmp.le.s32.totalorder 1, %s18
    %p362 = scmp.lt.s32.totalorder %s18, 3
    %p363 = pnand %p361, %p362
    %p364 = pneg %p363
    // Predicated region
    $region65: #{main_block_forward.1} parent=5 // pred_check
      _
    $region66: #{main_block_forward.1} parent=5 // pred_check_branch
      %366 = sbr.rel (%p363) target = $region68
    $region67: #{main_block_forward.1} parent=5 // pred_region
      %s367 = ssub.s32 %s18, 1
      %p368 = scmp.lt.s32.totalorder %s23, 1
      %s369 = scalar_select %p368, %s23, 1
      %s370 = smul.addr %s369, 4
      %s371 = smul.addr %s370, 8
      %s372 = scalar_lea.vmem %s0, %s371
      %p373 = pneg %p44
      %p374 = pneg %p41
      %p375 = pneg %p65
      %p376 = pneg %p62
      %p377 = pneg %p86
      %p378 = pneg %p83
      %p379 = pneg %p107
      %p380 = pneg %p104
      %p381 = pneg %p128
      %p382 = pneg %p125
      %p383 = pneg %p149
      %p384 = pneg %p146
      %p385 = pneg %p170
      %p386 = pneg %p167
      %p387 = pneg %p191
      %p388 = pneg %p188
      %p389 = pneg %p212
      %p390 = pneg %p209
      %p391 = pneg %p233
      %p392 = pneg %p230
      %p393 = pneg %p254
      %p394 = pneg %p251
      %p395 = pneg %p275
      %p396 = pneg %p272
      %p397 = pneg %p301
      %p398 = pneg %p298
      %p399 = scmp.lt.s32.totalorder %s23, 1
      %s400 = scalar_select %p399, %s23, 1
      %s401 = smul.addr %s400, 4
      %s402 = smul.addr %s401, 8
      %s403 = scalar_lea.vmem %s12, %s402
      %p404 = scmp.lt.s32.totalorder %s23, 1
      %s405 = scalar_select %p404, %s23, 1
      %s406 = smul.addr %s405, 4
      %s407 = smul.addr %s406, 8
      %s408 = scalar_lea.vmem %s0, %s407
      %p409 = scmp.lt.s32.totalorder %s23, 1
      %s410 = scalar_select %p409, %s23, 1
      %s411 = smul.addr %s410, 4
      %s412 = smul.addr %s411, 8
      %s413 = scalar_lea.vmem %s12, %s412
      %v414 = vld [vmem:[%s408] sm:$0xff]
      %v415 = vld [vmem:[%s408 + $0x8] sm:$0xff]
      %v416 = vld [vmem:[%s408 + $0x10] sm:$0xff]
      %v417 = vld [vmem:[%s408 + $0x18] sm:$0xff]
      %v418 = vld [vmem:[%s1] ss:$2 sm:$0x3]
      %s419 = scalar_lea.vmem %s1, 1
      %v420 = vld [vmem:[%s419] ss:$2 sm:$0x3]
      %425 = vrot.lane.b32.xlu0 %v414, 17
      %v426 = vpop.permute.xlu0 %425
      %427 = vrot.lane.b32.xlu0 %v415, 17
      %v428 = vpop.permute.xlu0 %427
      %429 = vrot.lane.b32.xlu0 %v416, 17
      %v430 = vpop.permute.xlu0 %429
      %431 = vrot.lane.b32.xlu0 %v417, 17
      %v432 = vpop.permute.xlu0 %431
      %vm433 = vcmask 138240
      %v434 = vsel %vm433, %v426, %v428
      %v435 = vsel %vm433, %v430, %v432
      %v442 = vsel %vm433, 0.0, %v426
      %v443 = vsel %vm433, 0.0, %v430
      %v444 = vsel %vm433, %v428, 0.0
      %v445 = vsel %vm433, %v432, 0.0
      %v447 = vperm.slane %v418, 0
      %v448 = vperm.slane %v418, 1
      %v451 = vmul.f32 %v442, %v447
      %v452 = vmul.f32 %v434, %v448
      %v453 = vmul.f32 %v443, %v447
      %v454 = vmul.f32 %v435, %v448
      %v456 = vperm.slane %v420, 0
      %v457 = vperm.slane %v420, 1
      %458 = vrot.lane.b32.xlu0 %v456, 2
      %v459 = vpop.permute.xlu0 %458
      %460 = vrot.lane.b32.xlu0 %v457, 2
      %v461 = vpop.permute.xlu0 %460
      %vm462 = vcmask 15360
      %v463 = vsel %vm462, %v459, %v461
      %v467 = vmul.f32 %v442, %v459
      %v468 = vmul.f32 %v434, %v463
      %v469 = vmul.f32 %v444, %v461
      %v470 = vmul.f32 %v443, %v459
      %v471 = vmul.f32 %v435, %v463
      %v472 = vmul.f32 %v445, %v461
      %473 = vrot.lane.b32.xlu0 %v447, 16
      %v474 = vpop.permute.xlu0 %473
      %475 = vrot.lane.b32.xlu0 %v448, 16
      %v476 = vpop.permute.xlu0 %475
      %vm477 = vcmask 130048
      %v478 = vsel %vm477, %v474, %v476
      %v482 = vmul.f32 %v442, %v474
      %v483 = vmul.f32 %v434, %v478
      %v484 = vmul.f32 %v444, %v476
      %v485 = vmul.f32 %v443, %v474
      %v486 = vmul.f32 %v435, %v478
      %v487 = vmul.f32 %v445, %v476
      %488 = vrot.lane.b32.xlu0 %v456, 18
      %v489 = vpop.permute.xlu0 %488
      %490 = vrot.lane.b32.xlu0 %v457, 18
      %v491 = vpop.permute.xlu0 %490
      %vm492 = vcmask 146432
      %v493 = vsel %vm492, %v489, %v491
      %v497 = vmul.f32 %v442, %v489
      %v498 = vmul.f32 %v434, %v493
      %v499 = vmul.f32 %v444, %v491
      %v500 = vmul.f32 %v443, %v489
      %v501 = vmul.f32 %v435, %v493
      %v502 = vmul.f32 %v445, %v491
      %503 = vrot.lane.b32.xlu0 %v447, 32
      %v504 = vpop.permute.xlu0 %503
      %505 = vrot.lane.b32.xlu0 %v448, 32
      %v506 = vpop.permute.xlu0 %505
      %vm507 = vcmask 261120
      %v508 = vsel %vm507, %v504, %v506
      %v512 = vmul.f32 %v442, %v504
      %v513 = vmul.f32 %v434, %v508
      %v514 = vmul.f32 %v444, %v506
      %v515 = vmul.f32 %v443, %v504
      %v516 = vmul.f32 %v435, %v508
      %v517 = vmul.f32 %v445, %v506
      %518 = vrot.lane.b32.xlu0 %v456, 34
      %v519 = vpop.permute.xlu0 %518
      %520 = vrot.lane.b32.xlu0 %v457, 34
      %v521 = vpop.permute.xlu0 %520
      %vm522 = vcmask 277504
      %v523 = vsel %vm522, %v519, %v521
      %v527 = vmul.f32 %v442, %v519
      %v528 = vmul.f32 %v434, %v523
      %v529 = vmul.f32 %v444, %v521
      %v530 = vmul.f32 %v443, %v519
      %v531 = vmul.f32 %v435, %v523
      %v532 = vmul.f32 %v445, %v521
      %537 = vrot.lane.b32.xlu0 %v442, 127
      %v538 = vpop.permute.xlu0 %537
      %539 = vrot.lane.b32.xlu0 %v434, 127
      %v540 = vpop.permute.xlu0 %539
      %541 = vrot.lane.b32.xlu0 %v444, 127
      %v542 = vpop.permute.xlu0 %541
      %543 = vrot.lane.b32.xlu0 %v443, 127
      %v544 = vpop.permute.xlu0 %543
      %545 = vrot.lane.b32.xlu0 %v435, 127
      %v546 = vpop.permute.xlu0 %545
      %547 = vrot.lane.b32.xlu0 %v445, 127
      %v548 = vpop.permute.xlu0 %547
      %vm549 = vcmask 1039360
      %v550 = vsel %vm549, %v538, %v540
      %v551 = vsel %vm549, %v540, %v542
      %v552 = vsel %vm549, %v544, %v546
      %v553 = vsel %vm549, %v546, %v548
      %564 = vrot.lane.b32.xlu0 %v467, 126
      %v565 = vpop.permute.xlu0 %564
      %566 = vrot.lane.b32.xlu0 %v468, 126
      %v567 = vpop.permute.xlu0 %566
      %568 = vrot.lane.b32.xlu0 %v469, 126
      %v569 = vpop.permute.xlu0 %568
      %570 = vrot.lane.b32.xlu0 %v470, 126
      %v571 = vpop.permute.xlu0 %570
      %572 = vrot.lane.b32.xlu0 %v471, 126
      %v573 = vpop.permute.xlu0 %572
      %574 = vrot.lane.b32.xlu0 %v472, 126
      %v575 = vpop.permute.xlu0 %574
      %vm576 = vcmask 1031168
      %v577 = vsel %vm576, %v565, %v567
      %v578 = vsel %vm576, %v567, %v569
      %v579 = vsel %vm576, %v571, %v573
      %v580 = vsel %vm576, %v573, %v575
      %591 = vrot.lane.b32.xlu0 %v482, 112
      %v592 = vpop.permute.xlu0 %591
      %593 = vrot.lane.b32.xlu0 %v483, 112
      %v594 = vpop.permute.xlu0 %593
      %595 = vrot.lane.b32.xlu0 %v484, 112
      %v596 = vpop.permute.xlu0 %595
      %597 = vrot.lane.b32.xlu0 %v485, 112
      %v598 = vpop.permute.xlu0 %597
      %599 = vrot.lane.b32.xlu0 %v486, 112
      %v600 = vpop.permute.xlu0 %599
      %601 = vrot.lane.b32.xlu0 %v487, 112
      %v602 = vpop.permute.xlu0 %601
      %vm603 = vcmask 916480
      %v604 = vsel %vm603, %v592, %v594
      %v605 = vsel %vm603, %v594, %v596
      %v606 = vsel %vm603, %v598, %v600
      %v607 = vsel %vm603, %v600, %v602
      %612 = vrot.lane.b32.xlu0 %v442, 111
      %v613 = vpop.permute.xlu0 %612
      %614 = vrot.lane.b32.xlu0 %v434, 111
      %v615 = vpop.permute.xlu0 %614
      %616 = vrot.lane.b32.xlu0 %v444, 111
      %v617 = vpop.permute.xlu0 %616
      %618 = vrot.lane.b32.xlu0 %v443, 111
      %v619 = vpop.permute.xlu0 %618
      %620 = vrot.lane.b32.xlu0 %v435, 111
      %v621 = vpop.permute.xlu0 %620
      %622 = vrot.lane.b32.xlu0 %v445, 111
      %v623 = vpop.permute.xlu0 %622
      %vm624 = vcmask 908288
      %v625 = vsel %vm624, %v613, %v615
      %v626 = vsel %vm624, %v615, %v617
      %v627 = vsel %vm624, %v619, %v621
      %v628 = vsel %vm624, %v621, %v623
      %639 = vrot.lane.b32.xlu0 %v497, 110
      %v640 = vpop.permute.xlu0 %639
      %641 = vrot.lane.b32.xlu0 %v498, 110
      %v642 = vpop.permute.xlu0 %641
      %643 = vrot.lane.b32.xlu0 %v499, 110
      %v644 = vpop.permute.xlu0 %643
      %645 = vrot.lane.b32.xlu0 %v500, 110
      %v646 = vpop.permute.xlu0 %645
      %647 = vrot.lane.b32.xlu0 %v501, 110
      %v648 = vpop.permute.xlu0 %647
      %649 = vrot.lane.b32.xlu0 %v502, 110
      %v650 = vpop.permute.xlu0 %649
      %vm651 = vcmask 900096
      %v652 = vsel %vm651, %v640, %v642
      %v653 = vsel %vm651, %v642, %v644
      %v654 = vsel %vm651, %v646, %v648
      %v655 = vsel %vm651, %v648, %v650
      %666 = vrot.lane.b32.xlu0 %v512, 96
      %v667 = vpop.permute.xlu0 %666
      %668 = vrot.lane.b32.xlu0 %v513, 96
      %v669 = vpop.permute.xlu0 %668
      %670 = vrot.lane.b32.xlu0 %v514, 96
      %v671 = vpop.permute.xlu0 %670
      %672 = vrot.lane.b32.xlu0 %v515, 96
      %v673 = vpop.permute.xlu0 %672
      %674 = vrot.lane.b32.xlu0 %v516, 96
      %v675 = vpop.permute.xlu0 %674
      %676 = vrot.lane.b32.xlu0 %v517, 96
      %v677 = vpop.permute.xlu0 %676
      %vm678 = vcmask 785408
      %v679 = vsel %vm678, %v667, %v669
      %v680 = vsel %vm678, %v669, %v671
      %v681 = vsel %vm678, %v673, %v675
      %v682 = vsel %vm678, %v675, %v677
      %687 = vrot.lane.b32.xlu0 %v442, 95
      %v688 = vpop.permute.xlu0 %687
      %689 = vrot.lane.b32.xlu0 %v434, 95
      %v690 = vpop.permute.xlu0 %689
      %691 = vrot.lane.b32.xlu0 %v444, 95
      %v692 = vpop.permute.xlu0 %691
      %693 = vrot.lane.b32.xlu0 %v443, 95
      %v694 = vpop.permute.xlu0 %693
      %695 = vrot.lane.b32.xlu0 %v435, 95
      %v696 = vpop.permute.xlu0 %695
      %697 = vrot.lane.b32.xlu0 %v445, 95
      %v698 = vpop.permute.xlu0 %697
      %vm699 = vcmask 777216
      %v700 = vsel %vm699, %v688, %v690
      %v701 = vsel %vm699, %v690, %v692
      %v702 = vsel %vm699, %v694, %v696
      %v703 = vsel %vm699, %v696, %v698
      %714 = vrot.lane.b32.xlu0 %v527, 94
      %v715 = vpop.permute.xlu0 %714
      %716 = vrot.lane.b32.xlu0 %v528, 94
      %v717 = vpop.permute.xlu0 %716
      %718 = vrot.lane.b32.xlu0 %v529, 94
      %v719 = vpop.permute.xlu0 %718
      %720 = vrot.lane.b32.xlu0 %v530, 94
      %v721 = vpop.permute.xlu0 %720
      %722 = vrot.lane.b32.xlu0 %v531, 94
      %v723 = vpop.permute.xlu0 %722
      %724 = vrot.lane.b32.xlu0 %v532, 94
      %v725 = vpop.permute.xlu0 %724
      %vm726 = vcmask 769024
      %v727 = vsel %vm726, %v715, %v717
      %v728 = vsel %vm726, %v717, %v719
      %v729 = vsel %vm726, %v721, %v723
      %v730 = vsel %vm726, %v723, %v725
      %v735 = vld [vmem:[%s2] sm:$0xff]
      %v736 = vld [vmem:[%s2 + $0x8] sm:$0xff]
      %v737 = vld [vmem:[%s2 + $0x10] sm:$0xff]
      %v738 = vld [vmem:[%s2 + $0x18] sm:$0xff]
      %v739 = vld [vmem:[%s2 + $0x20] sm:$0xff]
      %v740 = vld [vmem:[%s2 + $0x28] sm:$0xff]
      %v741 = vld [vmem:[%s3] sm:$0xff]
      %v742 = vld [vmem:[%s3 + $0x8] sm:$0xff]
      %v743 = vld [vmem:[%s3 + $0x10] sm:$0xff]
      %745 = vset.pattern.permute.xlu0 0
      %746 = vperm.xlu0 %745, %v741
      %v747 = vpop.permute.xlu0 %746
      %750 = vset.pattern.permute.xlu0 0
      %751 = vperm.xlu0 %750, %v742
      %v752 = vpop.permute.xlu0 %751
      %755 = vset.pattern.permute.xlu0 0
      %756 = vperm.xlu0 %755, %v743
      %v757 = vpop.permute.xlu0 %756
      %v760 = vsel %vm477, %v736, 0
      %v763 = vsel %vm477, %v738, 0
      %v766 = vsel %vm477, %v740, 0
      %768 = vmatpush.msra.mxu0 %v702
      %769 = vmatpush.msra.mxu0 %v700
      %770 = vmatpush.msra.mxu0 %v681
      %771 = vmatpush.msra.mxu0 %v679
      %772 = vmatpush.msra.mxu0 %v654
      %773 = vmatpush.msra.mxu0 %v652
      %774 = vmatpush.msra.mxu0 %v627
      %775 = vmatpush.msra.mxu0 %v625
      %776 = vmatpush.msra.mxu0 %v606
      %777 = vmatpush.msra.mxu0 %v604
      %778 = vmatpush.msra.mxu0 %v579
      %779 = vmatpush.msra.mxu0 %v577
      %780 = vmatpush.msra.mxu0 %v552
      %781 = vmatpush.msra.mxu0 %v550
      %782 = vmatpush.msra.mxu0 %v453
      %783 = vmatpush.msra.mxu0 %v451
      %784 = vmatmul.f32.gmra.mxu0 %v735
      %v785 = vpop.f32.mrf.mxu0
      %v786 = vadd.f32 %v747, %v785
      %787 = vmatmul.f32.gmra.mxu0 %v737
      %v788 = vpop.f32.mrf.mxu0
      %v789 = vadd.f32 %v752, %v788
      %790 = vmatmul.f32.gmra.mxu0 %v739
      %v791 = vpop.f32.mrf.mxu0
      %v792 = vadd.f32 %v757, %v791
      %793 = vdwg.mxu0
      %794 = vmatpush.msra.mxu0 0.0
      %795 = vmatpush.msra.mxu0 0.0
      %796 = vmatpush.msra.mxu0 0.0
      %797 = vmatpush.msra.mxu0 0.0
      %798 = vmatpush.msra.mxu0 0.0
      %799 = vmatpush.msra.mxu0 0.0
      %800 = vmatpush.msra.mxu0 0.0
      %801 = vmatpush.msra.mxu0 0.0
      %802 = vmatpush.msra.mxu0 0.0
      %803 = vmatpush.msra.mxu0 0.0
      %804 = vmatpush.msra.mxu0 0.0
      %805 = vmatpush.msra.mxu0 0.0
      %806 = vmatpush.msra.mxu0 0.0
      %807 = vmatpush.msra.mxu0 0.0
      %808 = vmatpush.msra.mxu0 %v729
      %809 = vmatpush.msra.mxu0 %v727
      %810 = vmatmul.f32.gmra.mxu0 %v760
      %v811 = vpop.f32.mrf.mxu0
      %v812 = vadd.f32 %v786, %v811
      %813 = vmatmul.f32.gmra.mxu0 %v763
      %v814 = vpop.f32.mrf.mxu0
      %v815 = vadd.f32 %v789, %v814
      %816 = vmatmul.f32.gmra.mxu0 %v766
      %v817 = vpop.f32.mrf.mxu0
      %v818 = vadd.f32 %v792, %v817
      %819 = vdwg.mxu0
      %820 = vmatpush.msra.mxu0 %v703
      %821 = vmatpush.msra.mxu0 %v701
      %822 = vmatpush.msra.mxu0 %v682
      %823 = vmatpush.msra.mxu0 %v680
      %824 = vmatpush.msra.mxu0 %v655
      %825 = vmatpush.msra.mxu0 %v653
      %826 = vmatpush.msra.mxu0 %v628
      %827 = vmatpush.msra.mxu0 %v626
      %828 = vmatpush.msra.mxu0 %v607
      %829 = vmatpush.msra.mxu0 %v605
      %830 = vmatpush.msra.mxu0 %v580
      %831 = vmatpush.msra.mxu0 %v578
      %832 = vmatpush.msra.mxu0 %v553
      %833 = vmatpush.msra.mxu0 %v551
      %834 = vmatpush.msra.mxu0 %v454
      %835 = vmatpush.msra.mxu0 %v452
      %836 = vmatmul.f32.gmra.mxu0 %v735
      %v837 = vpop.f32.mrf.mxu0
      %v838 = vadd.f32 %v747, %v837
      %839 = vmatmul.f32.gmra.mxu0 %v737
      %v840 = vpop.f32.mrf.mxu0
      %v841 = vadd.f32 %v752, %v840
      %842 = vmatmul.f32.gmra.mxu0 %v739
      %v843 = vpop.f32.mrf.mxu0
      %v844 = vadd.f32 %v757, %v843
      %845 = vdwg.mxu0
      %846 = vmatpush.msra.mxu0 0.0
      %847 = vmatpush.msra.mxu0 0.0
      %848 = vmatpush.msra.mxu0 0.0
      %849 = vmatpush.msra.mxu0 0.0
      %850 = vmatpush.msra.mxu0 0.0
      %851 = vmatpush.msra.mxu0 0.0
      %852 = vmatpush.msra.mxu0 0.0
      %853 = vmatpush.msra.mxu0 0.0
      %854 = vmatpush.msra.mxu0 0.0
      %855 = vmatpush.msra.mxu0 0.0
      %856 = vmatpush.msra.mxu0 0.0
      %857 = vmatpush.msra.mxu0 0.0
      %858 = vmatpush.msra.mxu0 0.0
      %859 = vmatpush.msra.mxu0 0.0
      %860 = vmatpush.msra.mxu0 %v730
      %861 = vmatpush.msra.mxu0 %v728
      %862 = vmatmul.f32.gmra.mxu0 %v760
      %v863 = vpop.f32.mrf.mxu0
      %v864 = vadd.f32 %v838, %v863
      %865 = vmatmul.f32.gmra.mxu0 %v763
      %v866 = vpop.f32.mrf.mxu0
      %v867 = vadd.f32 %v841, %v866
      %868 = vmatmul.f32.gmra.mxu0 %v766
      %v869 = vpop.f32.mrf.mxu0
      %v870 = vadd.f32 %v844, %v869
      %871 = vdwg.mxu0
      %vm872 = vcmp.ge.f32.partialorder %v812, 0.0
      %vm873 = vcmp.ge.f32.partialorder %v864, 0.0
      %v874 = vmul.f32 %v812, 0.05
      %v875 = vmul.f32 %v864, 0.05
      %v876 = vsel %vm872, %v812, %v874
      %v877 = vsel %vm873, %v864, %v875
      %v878 = vadd.f32 %v815, %v414
      %v879 = vadd.f32 %v867, %v415
      %v880 = vadd.f32 %v818, %v416
      %v881 = vadd.f32 %v870, %v417
      %vm882 = vcmp.ge.f32.partialorder %v878, 0.0
      %vm883 = vcmp.ge.f32.partialorder %v879, 0.0
      %vm884 = vcmp.ge.f32.partialorder %v880, 0.0
      %vm885 = vcmp.ge.f32.partialorder %v881, 0.0
      %v886 = vmul.f32 %v878, 0.05
      %v887 = vmul.f32 %v879, 0.05
      %v888 = vmul.f32 %v880, 0.05
      %v889 = vmul.f32 %v881, 0.05
      %v890 = vsel %vm882, %v878, %v886
      %v891 = vsel %vm883, %v879, %v887
      %v892 = vsel %vm884, %v880, %v888
      %v893 = vsel %vm885, %v881, %v889
      %898 = vrot.lane.b32.xlu0 %v890, 17
      %v899 = vpop.permute.xlu0 %898
      %900 = vrot.lane.b32.xlu0 %v891, 17
      %v901 = vpop.permute.xlu0 %900
      %902 = vrot.lane.b32.xlu0 %v892, 17
      %v903 = vpop.permute.xlu0 %902
      %904 = vrot.lane.b32.xlu0 %v893, 17
      %v905 = vpop.permute.xlu0 %904
      %v906 = vsel %vm433, %v899, %v901
      %v907 = vsel %vm433, %v903, %v905
      %v914 = vsel %vm433, 0.0, %v899
      %v915 = vsel %vm433, 0.0, %v903
      %v916 = vsel %vm433, %v901, 0.0
      %v917 = vsel %vm433, %v905, 0.0
      %v918 = vmul.f32 %v914, %v447
      %v919 = vmul.f32 %v906, %v448
      %v920 = vmul.f32 %v915, %v447
      %v921 = vmul.f32 %v907, %v448
      %v922 = vmul.f32 %v914, %v459
      %v923 = vmul.f32 %v906, %v463
      %v924 = vmul.f32 %v916, %v461
      %v925 = vmul.f32 %v915, %v459
      %v926 = vmul.f32 %v907, %v463
      %v927 = vmul.f32 %v917, %v461
      %v928 = vmul.f32 %v914, %v474
      %v929 = vmul.f32 %v906, %v478
      %v930 = vmul.f32 %v916, %v476
      %v931 = vmul.f32 %v915, %v474
      %v932 = vmul.f32 %v907, %v478
      %v933 = vmul.f32 %v917, %v476
      %v934 = vmul.f32 %v914, %v489
      %v935 = vmul.f32 %v906, %v493
      %v936 = vmul.f32 %v916, %v491
      %v937 = vmul.f32 %v915, %v489
      %v938 = vmul.f32 %v907, %v493
      %v939 = vmul.f32 %v917, %v491
      %v940 = vmul.f32 %v914, %v504
      %v941 = vmul.f32 %v906, %v508
      %v942 = vmul.f32 %v916, %v506
      %v943 = vmul.f32 %v915, %v504
      %v944 = vmul.f32 %v907, %v508
      %v945 = vmul.f32 %v917, %v506
      %v946 = vmul.f32 %v914, %v519
      %v947 = vmul.f32 %v906, %v523
      %v948 = vmul.f32 %v916, %v521
      %v949 = vmul.f32 %v915, %v519
      %v950 = vmul.f32 %v907, %v523
      %v951 = vmul.f32 %v917, %v521
      %956 = vrot.lane.b32.xlu0 %v914, 127
      %v957 = vpop.permute.xlu0 %956
      %958 = vrot.lane.b32.xlu0 %v906, 127
      %v959 = vpop.permute.xlu0 %958
      %960 = vrot.lane.b32.xlu0 %v916, 127
      %v961 = vpop.permute.xlu0 %960
      %962 = vrot.lane.b32.xlu0 %v915, 127
      %v963 = vpop.permute.xlu0 %962
      %964 = vrot.lane.b32.xlu0 %v907, 127
      %v965 = vpop.permute.xlu0 %964
      %966 = vrot.lane.b32.xlu0 %v917, 127
      %v967 = vpop.permute.xlu0 %966
      %v968 = vsel %vm549, %v957, %v959
      %v969 = vsel %vm549, %v959, %v961
      %v970 = vsel %vm549, %v963, %v965
      %v971 = vsel %vm549, %v965, %v967
      %982 = vrot.lane.b32.xlu0 %v922, 126
      %v983 = vpop.permute.xlu0 %982
      %984 = vrot.lane.b32.xlu0 %v923, 126
      %v985 = vpop.permute.xlu0 %984
      %986 = vrot.lane.b32.xlu0 %v924, 126
      %v987 = vpop.permute.xlu0 %986
      %988 = vrot.lane.b32.xlu0 %v925, 126
      %v989 = vpop.permute.xlu0 %988
      %990 = vrot.lane.b32.xlu0 %v926, 126
      %v991 = vpop.permute.xlu0 %990
      %992 = vrot.lane.b32.xlu0 %v927, 126
      %v993 = vpop.permute.xlu0 %992
      %v994 = vsel %vm576, %v983, %v985
      %v995 = vsel %vm576, %v985, %v987
      %v996 = vsel %vm576, %v989, %v991
      %v997 = vsel %vm576, %v991, %v993
      %1008 = vrot.lane.b32.xlu0 %v928, 112
      %v1009 = vpop.permute.xlu0 %1008
      %1010 = vrot.lane.b32.xlu0 %v929, 112
      %v1011 = vpop.permute.xlu0 %1010
      %1012 = vrot.lane.b32.xlu0 %v930, 112
      %v1013 = vpop.permute.xlu0 %1012
      %1014 = vrot.lane.b32.xlu0 %v931, 112
      %v1015 = vpop.permute.xlu0 %1014
      %1016 = vrot.lane.b32.xlu0 %v932, 112
      %v1017 = vpop.permute.xlu0 %1016
      %1018 = vrot.lane.b32.xlu0 %v933, 112
      %v1019 = vpop.permute.xlu0 %1018
      %v1020 = vsel %vm603, %v1009, %v1011
      %v1021 = vsel %vm603, %v1011, %v1013
      %v1022 = vsel %vm603, %v1015, %v1017
      %v1023 = vsel %vm603, %v1017, %v1019
      %1028 = vrot.lane.b32.xlu0 %v914, 111
      %v1029 = vpop.permute.xlu0 %1028
      %1030 = vrot.lane.b32.xlu0 %v906, 111
      %v1031 = vpop.permute.xlu0 %1030
      %1032 = vrot.lane.b32.xlu0 %v916, 111
      %v1033 = vpop.permute.xlu0 %1032
      %1034 = vrot.lane.b32.xlu0 %v915, 111
      %v1035 = vpop.permute.xlu0 %1034
      %1036 = vrot.lane.b32.xlu0 %v907, 111
      %v1037 = vpop.permute.xlu0 %1036
      %1038 = vrot.lane.b32.xlu0 %v917, 111
      %v1039 = vpop.permute.xlu0 %1038
      %v1040 = vsel %vm624, %v1029, %v1031
      %v1041 = vsel %vm624, %v1031, %v1033
      %v1042 = vsel %vm624, %v1035, %v1037
      %v1043 = vsel %vm624, %v1037, %v1039
      %1054 = vrot.lane.b32.xlu0 %v934, 110
      %v1055 = vpop.permute.xlu0 %1054
      %1056 = vrot.lane.b32.xlu0 %v935, 110
      %v1057 = vpop.permute.xlu0 %1056
      %1058 = vrot.lane.b32.xlu0 %v936, 110
      %v1059 = vpop.permute.xlu0 %1058
      %1060 = vrot.lane.b32.xlu0 %v937, 110
      %v1061 = vpop.permute.xlu0 %1060
      %1062 = vrot.lane.b32.xlu0 %v938, 110
      %v1063 = vpop.permute.xlu0 %1062
      %1064 = vrot.lane.b32.xlu0 %v939, 110
      %v1065 = vpop.permute.xlu0 %1064
      %v1066 = vsel %vm651, %v1055, %v1057
      %v1067 = vsel %vm651, %v1057, %v1059
      %v1068 = vsel %vm651, %v1061, %v1063
      %v1069 = vsel %vm651, %v1063, %v1065
      %1080 = vrot.lane.b32.xlu0 %v940, 96
      %v1081 = vpop.permute.xlu0 %1080
      %1082 = vrot.lane.b32.xlu0 %v941, 96
      %v1083 = vpop.permute.xlu0 %1082
      %1084 = vrot.lane.b32.xlu0 %v942, 96
      %v1085 = vpop.permute.xlu0 %1084
      %1086 = vrot.lane.b32.xlu0 %v943, 96
      %v1087 = vpop.permute.xlu0 %1086
      %1088 = vrot.lane.b32.xlu0 %v944, 96
      %v1089 = vpop.permute.xlu0 %1088
      %1090 = vrot.lane.b32.xlu0 %v945, 96
      %v1091 = vpop.permute.xlu0 %1090
      %v1092 = vsel %vm678, %v1081, %v1083
      %v1093 = vsel %vm678, %v1083, %v1085
      %v1094 = vsel %vm678, %v1087, %v1089
      %v1095 = vsel %vm678, %v1089, %v1091
      %1100 = vrot.lane.b32.xlu0 %v914, 95
      %v1101 = vpop.permute.xlu0 %1100
      %1102 = vrot.lane.b32.xlu0 %v906, 95
      %v1103 = vpop.permute.xlu0 %1102
      %1104 = vrot.lane.b32.xlu0 %v916, 95
      %v1105 = vpop.permute.xlu0 %1104
      %1106 = vrot.lane.b32.xlu0 %v915, 95
      %v1107 = vpop.permute.xlu0 %1106
      %1108 = vrot.lane.b32.xlu0 %v907, 95
      %v1109 = vpop.permute.xlu0 %1108
      %1110 = vrot.lane.b32.xlu0 %v917, 95
      %v1111 = vpop.permute.xlu0 %1110
      %v1112 = vsel %vm699, %v1101, %v1103
      %v1113 = vsel %vm699, %v1103, %v1105
      %v1114 = vsel %vm699, %v1107, %v1109
      %v1115 = vsel %vm699, %v1109, %v1111
      %1126 = vrot.lane.b32.xlu0 %v946, 94
      %v1127 = vpop.permute.xlu0 %1126
      %1128 = vrot.lane.b32.xlu0 %v947, 94
      %v1129 = vpop.permute.xlu0 %1128
      %1130 = vrot.lane.b32.xlu0 %v948, 94
      %v1131 = vpop.permute.xlu0 %1130
      %1132 = vrot.lane.b32.xlu0 %v949, 94
      %v1133 = vpop.permute.xlu0 %1132
      %1134 = vrot.lane.b32.xlu0 %v950, 94
      %v1135 = vpop.permute.xlu0 %1134
      %1136 = vrot.lane.b32.xlu0 %v951, 94
      %v1137 = vpop.permute.xlu0 %1136
      %v1138 = vsel %vm726, %v1127, %v1129
      %v1139 = vsel %vm726, %v1129, %v1131
      %v1140 = vsel %vm726, %v1133, %v1135
      %v1141 = vsel %vm726, %v1135, %v1137
      %s1146 = scalar_lea.vmem %s2, 48
      %v1147 = vld [vmem:[%s1146] sm:$0xff]
      %v1148 = vld [vmem:[%s1146 + $0x8] sm:$0xff]
      %v1149 = vld [vmem:[%s1146 + $0x10] sm:$0xff]
      %v1150 = vld [vmem:[%s1146 + $0x18] sm:$0xff]
      %v1151 = vld [vmem:[%s1146 + $0x20] sm:$0xff]
      %v1152 = vld [vmem:[%s1146 + $0x28] sm:$0xff]
      %s1153 = scalar_lea.vmem %s3, 24
      %v1154 = vld [vmem:[%s1153] sm:$0xff]
      %v1155 = vld [vmem:[%s1153 + $0x8] sm:$0xff]
      %v1156 = vld [vmem:[%s1153 + $0x10] sm:$0xff]
      %1158 = vset.pattern.permute.xlu0 0
      %1159 = vperm.xlu0 %1158, %v1154
      %v1160 = vpop.permute.xlu0 %1159
      %1163 = vset.pattern.permute.xlu0 0
      %1164 = vperm.xlu0 %1163, %v1155
      %v1165 = vpop.permute.xlu0 %1164
      %1168 = vset.pattern.permute.xlu0 0
      %1169 = vperm.xlu0 %1168, %v1156
      %v1170 = vpop.permute.xlu0 %1169
      %v1173 = vsel %vm477, %v1148, 0
      %v1176 = vsel %vm477, %v1150, 0
      %v1179 = vsel %vm477, %v1152, 0
      %1181 = vmatpush.msra.mxu0 %v1114
      %1182 = vmatpush.msra.mxu0 %v1112
      %1183 = vmatpush.msra.mxu0 %v1094
      %1184 = vmatpush.msra.mxu0 %v1092
      %1185 = vmatpush.msra.mxu0 %v1068
      %1186 = vmatpush.msra.mxu0 %v1066
      %1187 = vmatpush.msra.mxu0 %v1042
      %1188 = vmatpush.msra.mxu0 %v1040
      %1189 = vmatpush.msra.mxu0 %v1022
      %1190 = vmatpush.msra.mxu0 %v1020
      %1191 = vmatpush.msra.mxu0 %v996
      %1192 = vmatpush.msra.mxu0 %v994
      %1193 = vmatpush.msra.mxu0 %v970
      %1194 = vmatpush.msra.mxu0 %v968
      %1195 = vmatpush.msra.mxu0 %v920
      %1196 = vmatpush.msra.mxu0 %v918
      %1197 = vmatmul.f32.gmra.mxu0 %v1147
      %v1198 = vpop.f32.mrf.mxu0
      %v1199 = vadd.f32 %v1160, %v1198
      %1200 = vmatmul.f32.gmra.mxu0 %v1149
      %v1201 = vpop.f32.mrf.mxu0
      %v1202 = vadd.f32 %v1165, %v1201
      %1203 = vmatmul.f32.gmra.mxu0 %v1151
      %v1204 = vpop.f32.mrf.mxu0
      %v1205 = vadd.f32 %v1170, %v1204
      %1206 = vdwg.mxu0
      %1207 = vmatpush.msra.mxu0 0.0
      %1208 = vmatpush.msra.mxu0 0.0
      %1209 = vmatpush.msra.mxu0 0.0
      %1210 = vmatpush.msra.mxu0 0.0
      %1211 = vmatpush.msra.mxu0 0.0
      %1212 = vmatpush.msra.mxu0 0.0
      %1213 = vmatpush.msra.mxu0 0.0
      %1214 = vmatpush.msra.mxu0 0.0
      %1215 = vmatpush.msra.mxu0 0.0
      %1216 = vmatpush.msra.mxu0 0.0
      %1217 = vmatpush.msra.mxu0 0.0
      %1218 = vmatpush.msra.mxu0 0.0
      %1219 = vmatpush.msra.mxu0 0.0
      %1220 = vmatpush.msra.mxu0 0.0
      %1221 = vmatpush.msra.mxu0 %v1140
      %1222 = vmatpush.msra.mxu0 %v1138
      %1223 = vmatmul.f32.gmra.mxu0 %v1173
      %v1224 = vpop.f32.mrf.mxu0
      %v1225 = vadd.f32 %v1199, %v1224
      %1226 = vmatmul.f32.gmra.mxu0 %v1176
      %v1227 = vpop.f32.mrf.mxu0
      %v1228 = vadd.f32 %v1202, %v1227
      %1229 = vmatmul.f32.gmra.mxu0 %v1179
      %v1230 = vpop.f32.mrf.mxu0
      %v1231 = vadd.f32 %v1205, %v1230
      %1232 = vdwg.mxu0
      %1233 = vmatpush.msra.mxu0 %v1115
      %1234 = vmatpush.msra.mxu0 %v1113
      %1235 = vmatpush.msra.mxu0 %v1095
      %1236 = vmatpush.msra.mxu0 %v1093
      %1237 = vmatpush.msra.mxu0 %v1069
      %1238 = vmatpush.msra.mxu0 %v1067
      %1239 = vmatpush.msra.mxu0 %v1043
      %1240 = vmatpush.msra.mxu0 %v1041
      %1241 = vmatpush.msra.mxu0 %v1023
      %1242 = vmatpush.msra.mxu0 %v1021
      %1243 = vmatpush.msra.mxu0 %v997
      %1244 = vmatpush.msra.mxu0 %v995
      %1245 = vmatpush.msra.mxu0 %v971
      %1246 = vmatpush.msra.mxu0 %v969
      %1247 = vmatpush.msra.mxu0 %v921
      %1248 = vmatpush.msra.mxu0 %v919
      %1249 = vmatmul.f32.gmra.mxu0 %v1147
      %v1250 = vpop.f32.mrf.mxu0
      %v1251 = vadd.f32 %v1160, %v1250
      %1252 = vmatmul.f32.gmra.mxu0 %v1149
      %v1253 = vpop.f32.mrf.mxu0
      %v1254 = vadd.f32 %v1165, %v1253
      %1255 = vmatmul.f32.gmra.mxu0 %v1151
      %v1256 = vpop.f32.mrf.mxu0
      %v1257 = vadd.f32 %v1170, %v1256
      %1258 = vdwg.mxu0
      %1259 = vmatpush.msra.mxu0 0.0
      %1260 = vmatpush.msra.mxu0 0.0
      %1261 = vmatpush.msra.mxu0 0.0
      %1262 = vmatpush.msra.mxu0 0.0
      %1263 = vmatpush.msra.mxu0 0.0
      %1264 = vmatpush.msra.mxu0 0.0
      %1265 = vmatpush.msra.mxu0 0.0
      %1266 = vmatpush.msra.mxu0 0.0
      %1267 = vmatpush.msra.mxu0 0.0
      %1268 = vmatpush.msra.mxu0 0.0
      %1269 = vmatpush.msra.mxu0 0.0
      %1270 = vmatpush.msra.mxu0 0.0
      %1271 = vmatpush.msra.mxu0 0.0
      %1272 = vmatpush.msra.mxu0 0.0
      %1273 = vmatpush.msra.mxu0 %v1141
      %1274 = vmatpush.msra.mxu0 %v1139
      %1275 = vmatmul.f32.gmra.mxu0 %v1173
      %v1276 = vpop.f32.mrf.mxu0
      %v1277 = vadd.f32 %v1251, %v1276
      %1278 = vmatmul.f32.gmra.mxu0 %v1176
      %v1279 = vpop.f32.mrf.mxu0
      %v1280 = vadd.f32 %v1254, %v1279
      %1281 = vmatmul.f32.gmra.mxu0 %v1179
      %v1282 = vpop.f32.mrf.mxu0
      %v1283 = vadd.f32 %v1257, %v1282
      %1284 = vdwg.mxu0
      %vm1285 = vcmp.ge.f32.partialorder %v1225, 0.0
      %vm1286 = vcmp.ge.f32.partialorder %v1277, 0.0
      %v1287 = vmul.f32 %v1225, 0.05
      %v1288 = vmul.f32 %v1277, 0.05
      %v1289 = vsel %vm1285, %v1225, %v1287
      %v1290 = vsel %vm1286, %v1277, %v1288
      %v1291 = vadd.f32 %v1228, %v890
      %v1292 = vadd.f32 %v1280, %v891
      %v1293 = vadd.f32 %v1231, %v892
      %v1294 = vadd.f32 %v1283, %v893
      %vm1295 = vcmp.ge.f32.partialorder %v1291, 0.0
      %vm1296 = vcmp.ge.f32.partialorder %v1292, 0.0
      %vm1297 = vcmp.ge.f32.partialorder %v1293, 0.0
      %vm1298 = vcmp.ge.f32.partialorder %v1294, 0.0
      %v1299 = vmul.f32 %v1291, 0.05
      %v1300 = vmul.f32 %v1292, 0.05
      %v1301 = vmul.f32 %v1293, 0.05
      %v1302 = vmul.f32 %v1294, 0.05
      %v1303 = vsel %vm1295, %v1291, %v1299
      %v1304 = vsel %vm1296, %v1292, %v1300
      %v1305 = vsel %vm1297, %v1293, %v1301
      %v1306 = vsel %vm1298, %v1294, %v1302
      %1311 = vrot.lane.b32.xlu0 %v1303, 17
      %v1312 = vpop.permute.xlu0 %1311
      %1313 = vrot.lane.b32.xlu0 %v1304, 17
      %v1314 = vpop.permute.xlu0 %1313
      %1315 = vrot.lane.b32.xlu0 %v1305, 17
      %v1316 = vpop.permute.xlu0 %1315
      %1317 = vrot.lane.b32.xlu0 %v1306, 17
      %v1318 = vpop.permute.xlu0 %1317
      %v1319 = vsel %vm433, %v1312, %v1314
      %v1320 = vsel %vm433, %v1316, %v1318
      %v1327 = vsel %vm433, 0.0, %v1312
      %v1328 = vsel %vm433, 0.0, %v1316
      %v1329 = vsel %vm433, %v1314, 0.0
      %v1330 = vsel %vm433, %v1318, 0.0
      %v1331 = vmul.f32 %v1327, %v447
      %v1332 = vmul.f32 %v1319, %v448
      %v1333 = vmul.f32 %v1328, %v447
      %v1334 = vmul.f32 %v1320, %v448
      %v1335 = vmul.f32 %v1327, %v459
      %v1336 = vmul.f32 %v1319, %v463
      %v1337 = vmul.f32 %v1329, %v461
      %v1338 = vmul.f32 %v1328, %v459
      %v1339 = vmul.f32 %v1320, %v463
      %v1340 = vmul.f32 %v1330, %v461
      %v1341 = vmul.f32 %v1327, %v474
      %v1342 = vmul.f32 %v1319, %v478
      %v1343 = vmul.f32 %v1329, %v476
      %v1344 = vmul.f32 %v1328, %v474
      %v1345 = vmul.f32 %v1320, %v478
      %v1346 = vmul.f32 %v1330, %v476
      %v1347 = vmul.f32 %v1327, %v489
      %v1348 = vmul.f32 %v1319, %v493
      %v1349 = vmul.f32 %v1329, %v491
      %v1350 = vmul.f32 %v1328, %v489
      %v1351 = vmul.f32 %v1320, %v493
      %v1352 = vmul.f32 %v1330, %v491
      %v1353 = vmul.f32 %v1327, %v504
      %v1354 = vmul.f32 %v1319, %v508
      %v1355 = vmul.f32 %v1329, %v506
      %v1356 = vmul.f32 %v1328, %v504
      %v1357 = vmul.f32 %v1320, %v508
      %v1358 = vmul.f32 %v1330, %v506
      %v1359 = vmul.f32 %v1327, %v519
      %v1360 = vmul.f32 %v1319, %v523
      %v1361 = vmul.f32 %v1329, %v521
      %v1362 = vmul.f32 %v1328, %v519
      %v1363 = vmul.f32 %v1320, %v523
      %v1364 = vmul.f32 %v1330, %v521
      %1369 = vrot.lane.b32.xlu0 %v1327, 127
      %v1370 = vpop.permute.xlu0 %1369
      %1371 = vrot.lane.b32.xlu0 %v1319, 127
      %v1372 = vpop.permute.xlu0 %1371
      %1373 = vrot.lane.b32.xlu0 %v1329, 127
      %v1374 = vpop.permute.xlu0 %1373
      %1375 = vrot.lane.b32.xlu0 %v1328, 127
      %v1376 = vpop.permute.xlu0 %1375
      %1377 = vrot.lane.b32.xlu0 %v1320, 127
      %v1378 = vpop.permute.xlu0 %1377
      %1379 = vrot.lane.b32.xlu0 %v1330, 127
      %v1380 = vpop.permute.xlu0 %1379
      %v1381 = vsel %vm549, %v1370, %v1372
      %v1382 = vsel %vm549, %v1372, %v1374
      %v1383 = vsel %vm549, %v1376, %v1378
      %v1384 = vsel %vm549, %v1378, %v1380
      %1395 = vrot.lane.b32.xlu0 %v1335, 126
      %v1396 = vpop.permute.xlu0 %1395
      %1397 = vrot.lane.b32.xlu0 %v1336, 126
      %v1398 = vpop.permute.xlu0 %1397
      %1399 = vrot.lane.b32.xlu0 %v1337, 126
      %v1400 = vpop.permute.xlu0 %1399
      %1401 = vrot.lane.b32.xlu0 %v1338, 126
      %v1402 = vpop.permute.xlu0 %1401
      %1403 = vrot.lane.b32.xlu0 %v1339, 126
      %v1404 = vpop.permute.xlu0 %1403
      %1405 = vrot.lane.b32.xlu0 %v1340, 126
      %v1406 = vpop.permute.xlu0 %1405
      %v1407 = vsel %vm576, %v1396, %v1398
      %v1408 = vsel %vm576, %v1398, %v1400
      %v1409 = vsel %vm576, %v1402, %v1404
      %v1410 = vsel %vm576, %v1404, %v1406
      %1421 = vrot.lane.b32.xlu0 %v1341, 112
      %v1422 = vpop.permute.xlu0 %1421
      %1423 = vrot.lane.b32.xlu0 %v1342, 112
      %v1424 = vpop.permute.xlu0 %1423
      %1425 = vrot.lane.b32.xlu0 %v1343, 112
      %v1426 = vpop.permute.xlu0 %1425
      %1427 = vrot.lane.b32.xlu0 %v1344, 112
      %v1428 = vpop.permute.xlu0 %1427
      %1429 = vrot.lane.b32.xlu0 %v1345, 112
      %v1430 = vpop.permute.xlu0 %1429
      %1431 = vrot.lane.b32.xlu0 %v1346, 112
      %v1432 = vpop.permute.xlu0 %1431
      %v1433 = vsel %vm603, %v1422, %v1424
      %v1434 = vsel %vm603, %v1424, %v1426
      %v1435 = vsel %vm603, %v1428, %v1430
      %v1436 = vsel %vm603, %v1430, %v1432
      %1441 = vrot.lane.b32.xlu0 %v1327, 111
      %v1442 = vpop.permute.xlu0 %1441
      %1443 = vrot.lane.b32.xlu0 %v1319, 111
      %v1444 = vpop.permute.xlu0 %1443
      %1445 = vrot.lane.b32.xlu0 %v1329, 111
      %v1446 = vpop.permute.xlu0 %1445
      %1447 = vrot.lane.b32.xlu0 %v1328, 111
      %v1448 = vpop.permute.xlu0 %1447
      %1449 = vrot.lane.b32.xlu0 %v1320, 111
      %v1450 = vpop.permute.xlu0 %1449
      %1451 = vrot.lane.b32.xlu0 %v1330, 111
      %v1452 = vpop.permute.xlu0 %1451
      %v1453 = vsel %vm624, %v1442, %v1444
      %v1454 = vsel %vm624, %v1444, %v1446
      %v1455 = vsel %vm624, %v1448, %v1450
      %v1456 = vsel %vm624, %v1450, %v1452
      %1467 = vrot.lane.b32.xlu0 %v1347, 110
      %v1468 = vpop.permute.xlu0 %1467
      %1469 = vrot.lane.b32.xlu0 %v1348, 110
      %v1470 = vpop.permute.xlu0 %1469
      %1471 = vrot.lane.b32.xlu0 %v1349, 110
      %v1472 = vpop.permute.xlu0 %1471
      %1473 = vrot.lane.b32.xlu0 %v1350, 110
      %v1474 = vpop.permute.xlu0 %1473
      %1475 = vrot.lane.b32.xlu0 %v1351, 110
      %v1476 = vpop.permute.xlu0 %1475
      %1477 = vrot.lane.b32.xlu0 %v1352, 110
      %v1478 = vpop.permute.xlu0 %1477
      %v1479 = vsel %vm651, %v1468, %v1470
      %v1480 = vsel %vm651, %v1470, %v1472
      %v1481 = vsel %vm651, %v1474, %v1476
      %v1482 = vsel %vm651, %v1476, %v1478
      %1493 = vrot.lane.b32.xlu0 %v1353, 96
      %v1494 = vpop.permute.xlu0 %1493
      %1495 = vrot.lane.b32.xlu0 %v1354, 96
      %v1496 = vpop.permute.xlu0 %1495
      %1497 = vrot.lane.b32.xlu0 %v1355, 96
      %v1498 = vpop.permute.xlu0 %1497
      %1499 = vrot.lane.b32.xlu0 %v1356, 96
      %v1500 = vpop.permute.xlu0 %1499
      %1501 = vrot.lane.b32.xlu0 %v1357, 96
      %v1502 = vpop.permute.xlu0 %1501
      %1503 = vrot.lane.b32.xlu0 %v1358, 96
      %v1504 = vpop.permute.xlu0 %1503
      %v1505 = vsel %vm678, %v1494, %v1496
      %v1506 = vsel %vm678, %v1496, %v1498
      %v1507 = vsel %vm678, %v1500, %v1502
      %v1508 = vsel %vm678, %v1502, %v1504
      %1513 = vrot.lane.b32.xlu0 %v1327, 95
      %v1514 = vpop.permute.xlu0 %1513
      %1515 = vrot.lane.b32.xlu0 %v1319, 95
      %v1516 = vpop.permute.xlu0 %1515
      %1517 = vrot.lane.b32.xlu0 %v1329, 95
      %v1518 = vpop.permute.xlu0 %1517
      %1519 = vrot.lane.b32.xlu0 %v1328, 95
      %v1520 = vpop.permute.xlu0 %1519
      %1521 = vrot.lane.b32.xlu0 %v1320, 95
      %v1522 = vpop.permute.xlu0 %1521
      %1523 = vrot.lane.b32.xlu0 %v1330, 95
      %v1524 = vpop.permute.xlu0 %1523
      %v1525 = vsel %vm699, %v1514, %v1516
      %v1526 = vsel %vm699, %v1516, %v1518
      %v1527 = vsel %vm699, %v1520, %v1522
      %v1528 = vsel %vm699, %v1522, %v1524
      %1539 = vrot.lane.b32.xlu0 %v1359, 94
      %v1540 = vpop.permute.xlu0 %1539
      %1541 = vrot.lane.b32.xlu0 %v1360, 94
      %v1542 = vpop.permute.xlu0 %1541
      %1543 = vrot.lane.b32.xlu0 %v1361, 94
      %v1544 = vpop.permute.xlu0 %1543
      %1545 = vrot.lane.b32.xlu0 %v1362, 94
      %v1546 = vpop.permute.xlu0 %1545
      %1547 = vrot.lane.b32.xlu0 %v1363, 94
      %v1548 = vpop.permute.xlu0 %1547
      %1549 = vrot.lane.b32.xlu0 %v1364, 94
      %v1550 = vpop.permute.xlu0 %1549
      %v1551 = vsel %vm726, %v1540, %v1542
      %v1552 = vsel %vm726, %v1542, %v1544
      %v1553 = vsel %vm726, %v1546, %v1548
      %v1554 = vsel %vm726, %v1548, %v1550
      %s1559 = scalar_lea.vmem %s2, 96
      %v1560 = vld [vmem:[%s1559] sm:$0xff]
      %v1561 = vld [vmem:[%s1559 + $0x8] sm:$0xff]
      %v1562 = vld [vmem:[%s1559 + $0x10] sm:$0xff]
      %v1563 = vld [vmem:[%s1559 + $0x18] sm:$0xff]
      %v1564 = vld [vmem:[%s1559 + $0x20] sm:$0xff]
      %v1565 = vld [vmem:[%s1559 + $0x28] sm:$0xff]
      %s1566 = scalar_lea.vmem %s3, 48
      %v1567 = vld [vmem:[%s1566] sm:$0xff]
      %v1568 = vld [vmem:[%s1566 + $0x8] sm:$0xff]
      %v1569 = vld [vmem:[%s1566 + $0x10] sm:$0xff]
      %1571 = vset.pattern.permute.xlu0 0
      %1572 = vperm.xlu0 %1571, %v1567
      %v1573 = vpop.permute.xlu0 %1572
      %1576 = vset.pattern.permute.xlu0 0
      %1577 = vperm.xlu0 %1576, %v1568
      %v1578 = vpop.permute.xlu0 %1577
      %1581 = vset.pattern.permute.xlu0 0
      %1582 = vperm.xlu0 %1581, %v1569
      %v1583 = vpop.permute.xlu0 %1582
      %v1586 = vsel %vm477, %v1561, 0
      %v1589 = vsel %vm477, %v1563, 0
      %v1592 = vsel %vm477, %v1565, 0
      %1594 = vmatpush.msra.mxu0 %v1527
      %1595 = vmatpush.msra.mxu0 %v1525
      %1596 = vmatpush.msra.mxu0 %v1507
      %1597 = vmatpush.msra.mxu0 %v1505
      %1598 = vmatpush.msra.mxu0 %v1481
      %1599 = vmatpush.msra.mxu0 %v1479
      %1600 = vmatpush.msra.mxu0 %v1455
      %1601 = vmatpush.msra.mxu0 %v1453
      %1602 = vmatpush.msra.mxu0 %v1435
      %1603 = vmatpush.msra.mxu0 %v1433
      %1604 = vmatpush.msra.mxu0 %v1409
      %1605 = vmatpush.msra.mxu0 %v1407
      %1606 = vmatpush.msra.mxu0 %v1383
      %1607 = vmatpush.msra.mxu0 %v1381
      %1608 = vmatpush.msra.mxu0 %v1333
      %1609 = vmatpush.msra.mxu0 %v1331
      %1610 = vmatmul.f32.gmra.mxu0 %v1560
      %v1611 = vpop.f32.mrf.mxu0
      %v1612 = vadd.f32 %v1573, %v1611
      %1613 = vmatmul.f32.gmra.mxu0 %v1562
      %v1614 = vpop.f32.mrf.mxu0
      %v1615 = vadd.f32 %v1578, %v1614
      %1616 = vmatmul.f32.gmra.mxu0 %v1564
      %v1617 = vpop.f32.mrf.mxu0
      %v1618 = vadd.f32 %v1583, %v1617
      %1619 = vdwg.mxu0
      %1620 = vmatpush.msra.mxu0 0.0
      %1621 = vmatpush.msra.mxu0 0.0
      %1622 = vmatpush.msra.mxu0 0.0
      %1623 = vmatpush.msra.mxu0 0.0
      %1624 = vmatpush.msra.mxu0 0.0
      %1625 = vmatpush.msra.mxu0 0.0
      %1626 = vmatpush.msra.mxu0 0.0
      %1627 = vmatpush.msra.mxu0 0.0
      %1628 = vmatpush.msra.mxu0 0.0
      %1629 = vmatpush.msra.mxu0 0.0
      %1630 = vmatpush.msra.mxu0 0.0
      %1631 = vmatpush.msra.mxu0 0.0
      %1632 = vmatpush.msra.mxu0 0.0
      %1633 = vmatpush.msra.mxu0 0.0
      %1634 = vmatpush.msra.mxu0 %v1553
      %1635 = vmatpush.msra.mxu0 %v1551
      %1636 = vmatmul.f32.gmra.mxu0 %v1586
      %v1637 = vpop.f32.mrf.mxu0
      %v1638 = vadd.f32 %v1612, %v1637
      %1639 = vmatmul.f32.gmra.mxu0 %v1589
      %v1640 = vpop.f32.mrf.mxu0
      %v1641 = vadd.f32 %v1615, %v1640
      %1642 = vmatmul.f32.gmra.mxu0 %v1592
      %v1643 = vpop.f32.mrf.mxu0
      %v1644 = vadd.f32 %v1618, %v1643
      %1645 = vdwg.mxu0
      %1646 = vmatpush.msra.mxu0 %v1528
      %1647 = vmatpush.msra.mxu0 %v1526
      %1648 = vmatpush.msra.mxu0 %v1508
      %1649 = vmatpush.msra.mxu0 %v1506
      %1650 = vmatpush.msra.mxu0 %v1482
      %1651 = vmatpush.msra.mxu0 %v1480
      %1652 = vmatpush.msra.mxu0 %v1456
      %1653 = vmatpush.msra.mxu0 %v1454
      %1654 = vmatpush.msra.mxu0 %v1436
      %1655 = vmatpush.msra.mxu0 %v1434
      %1656 = vmatpush.msra.mxu0 %v1410
      %1657 = vmatpush.msra.mxu0 %v1408
      %1658 = vmatpush.msra.mxu0 %v1384
      %1659 = vmatpush.msra.mxu0 %v1382
      %1660 = vmatpush.msra.mxu0 %v1334
      %1661 = vmatpush.msra.mxu0 %v1332
      %1662 = vmatmul.f32.gmra.mxu0 %v1560
      %v1663 = vpop.f32.mrf.mxu0
      %v1664 = vadd.f32 %v1573, %v1663
      %1665 = vmatmul.f32.gmra.mxu0 %v1562
      %v1666 = vpop.f32.mrf.mxu0
      %v1667 = vadd.f32 %v1578, %v1666
      %1668 = vmatmul.f32.gmra.mxu0 %v1564
      %v1669 = vpop.f32.mrf.mxu0
      %v1670 = vadd.f32 %v1583, %v1669
      %1671 = vdwg.mxu0
      %1672 = vmatpush.msra.mxu0 0.0
      %1673 = vmatpush.msra.mxu0 0.0
      %1674 = vmatpush.msra.mxu0 0.0
      %1675 = vmatpush.msra.mxu0 0.0
      %1676 = vmatpush.msra.mxu0 0.0
      %1677 = vmatpush.msra.mxu0 0.0
      %1678 = vmatpush.msra.mxu0 0.0
      %1679 = vmatpush.msra.mxu0 0.0
      %1680 = vmatpush.msra.mxu0 0.0
      %1681 = vmatpush.msra.mxu0 0.0
      %1682 = vmatpush.msra.mxu0 0.0
      %1683 = vmatpush.msra.mxu0 0.0
      %1684 = vmatpush.msra.mxu0 0.0
      %1685 = vmatpush.msra.mxu0 0.0
      %1686 = vmatpush.msra.mxu0 %v1554
      %1687 = vmatpush.msra.mxu0 %v1552
      %1688 = vmatmul.f32.gmra.mxu0 %v1586
      %v1689 = vpop.f32.mrf.mxu0
      %v1690 = vadd.f32 %v1664, %v1689
      %1691 = vmatmul.f32.gmra.mxu0 %v1589
      %v1692 = vpop.f32.mrf.mxu0
      %v1693 = vadd.f32 %v1667, %v1692
      %1694 = vmatmul.f32.gmra.mxu0 %v1592
      %v1695 = vpop.f32.mrf.mxu0
      %v1696 = vadd.f32 %v1670, %v1695
      %1697 = vdwg.mxu0
      %vm1698 = vcmp.ge.f32.partialorder %v1638, 0.0
      %vm1699 = vcmp.ge.f32.partialorder %v1690, 0.0
      %v1700 = vmul.f32 %v1638, 0.05
      %v1701 = vmul.f32 %v1690, 0.05
      %v1702 = vsel %vm1698, %v1638, %v1700
      %v1703 = vsel %vm1699, %v1690, %v1701
      %v1704 = vadd.f32 %v1641, %v1303
      %v1705 = vadd.f32 %v1693, %v1304
      %v1706 = vadd.f32 %v1644, %v1305
      %v1707 = vadd.f32 %v1696, %v1306
      %vm1708 = vcmp.ge.f32.partialorder %v1704, 0.0
      %vm1709 = vcmp.ge.f32.partialorder %v1705, 0.0
      %vm1710 = vcmp.ge.f32.partialorder %v1706, 0.0
      %vm1711 = vcmp.ge.f32.partialorder %v1707, 0.0
      %v1712 = vmul.f32 %v1704, 0.05
      %v1713 = vmul.f32 %v1705, 0.05
      %v1714 = vmul.f32 %v1706, 0.05
      %v1715 = vmul.f32 %v1707, 0.05
      %v1716 = vsel %vm1708, %v1704, %v1712
      %v1717 = vsel %vm1709, %v1705, %v1713
      %v1718 = vsel %vm1710, %v1706, %v1714
      %v1719 = vsel %vm1711, %v1707, %v1715
      %1724 = vrot.lane.b32.xlu0 %v1716, 17
      %v1725 = vpop.permute.xlu0 %1724
      %1726 = vrot.lane.b32.xlu0 %v1717, 17
      %v1727 = vpop.permute.xlu0 %1726
      %1728 = vrot.lane.b32.xlu0 %v1718, 17
      %v1729 = vpop.permute.xlu0 %1728
      %1730 = vrot.lane.b32.xlu0 %v1719, 17
      %v1731 = vpop.permute.xlu0 %1730
      %v1732 = vsel %vm433, %v1725, %v1727
      %v1733 = vsel %vm433, %v1729, %v1731
      %v1740 = vsel %vm433, 0.0, %v1725
      %v1741 = vsel %vm433, 0.0, %v1729
      %v1742 = vsel %vm433, %v1727, 0.0
      %v1743 = vsel %vm433, %v1731, 0.0
      %v1744 = vmul.f32 %v1740, %v447
      %v1745 = vmul.f32 %v1732, %v448
      %v1746 = vmul.f32 %v1741, %v447
      %v1747 = vmul.f32 %v1733, %v448
      %v1748 = vmul.f32 %v1740, %v459
      %v1749 = vmul.f32 %v1732, %v463
      %v1750 = vmul.f32 %v1742, %v461
      %v1751 = vmul.f32 %v1741, %v459
      %v1752 = vmul.f32 %v1733, %v463
      %v1753 = vmul.f32 %v1743, %v461
      %v1754 = vmul.f32 %v1740, %v474
      %v1755 = vmul.f32 %v1732, %v478
      %v1756 = vmul.f32 %v1742, %v476
      %v1757 = vmul.f32 %v1741, %v474
      %v1758 = vmul.f32 %v1733, %v478
      %v1759 = vmul.f32 %v1743, %v476
      %v1760 = vmul.f32 %v1740, %v489
      %v1761 = vmul.f32 %v1732, %v493
      %v1762 = vmul.f32 %v1742, %v491
      %v1763 = vmul.f32 %v1741, %v489
      %v1764 = vmul.f32 %v1733, %v493
      %v1765 = vmul.f32 %v1743, %v491
      %v1766 = vmul.f32 %v1740, %v504
      %v1767 = vmul.f32 %v1732, %v508
      %v1768 = vmul.f32 %v1742, %v506
      %v1769 = vmul.f32 %v1741, %v504
      %v1770 = vmul.f32 %v1733, %v508
      %v1771 = vmul.f32 %v1743, %v506
      %v1772 = vmul.f32 %v1740, %v519
      %v1773 = vmul.f32 %v1732, %v523
      %v1774 = vmul.f32 %v1742, %v521
      %v1775 = vmul.f32 %v1741, %v519
      %v1776 = vmul.f32 %v1733, %v523
      %v1777 = vmul.f32 %v1743, %v521
      %1782 = vrot.lane.b32.xlu0 %v1740, 127
      %v1783 = vpop.permute.xlu0 %1782
      %1784 = vrot.lane.b32.xlu0 %v1732, 127
      %v1785 = vpop.permute.xlu0 %1784
      %1786 = vrot.lane.b32.xlu0 %v1742, 127
      %v1787 = vpop.permute.xlu0 %1786
      %1788 = vrot.lane.b32.xlu0 %v1741, 127
      %v1789 = vpop.permute.xlu0 %1788
      %1790 = vrot.lane.b32.xlu0 %v1733, 127
      %v1791 = vpop.permute.xlu0 %1790
      %1792 = vrot.lane.b32.xlu0 %v1743, 127
      %v1793 = vpop.permute.xlu0 %1792
      %v1794 = vsel %vm549, %v1783, %v1785
      %v1795 = vsel %vm549, %v1785, %v1787
      %v1796 = vsel %vm549, %v1789, %v1791
      %v1797 = vsel %vm549, %v1791, %v1793
      %1808 = vrot.lane.b32.xlu0 %v1748, 126
      %v1809 = vpop.permute.xlu0 %1808
      %1810 = vrot.lane.b32.xlu0 %v1749, 126
      %v1811 = vpop.permute.xlu0 %1810
      %1812 = vrot.lane.b32.xlu0 %v1750, 126
      %v1813 = vpop.permute.xlu0 %1812
      %1814 = vrot.lane.b32.xlu0 %v1751, 126
      %v1815 = vpop.permute.xlu0 %1814
      %1816 = vrot.lane.b32.xlu0 %v1752, 126
      %v1817 = vpop.permute.xlu0 %1816
      %1818 = vrot.lane.b32.xlu0 %v1753, 126
      %v1819 = vpop.permute.xlu0 %1818
      %v1820 = vsel %vm576, %v1809, %v1811
      %v1821 = vsel %vm576, %v1811, %v1813
      %v1822 = vsel %vm576, %v1815, %v1817
      %v1823 = vsel %vm576, %v1817, %v1819
      %1834 = vrot.lane.b32.xlu0 %v1754, 112
      %v1835 = vpop.permute.xlu0 %1834
      %1836 = vrot.lane.b32.xlu0 %v1755, 112
      %v1837 = vpop.permute.xlu0 %1836
      %1838 = vrot.lane.b32.xlu0 %v1756, 112
      %v1839 = vpop.permute.xlu0 %1838
      %1840 = vrot.lane.b32.xlu0 %v1757, 112
      %v1841 = vpop.permute.xlu0 %1840
      %1842 = vrot.lane.b32.xlu0 %v1758, 112
      %v1843 = vpop.permute.xlu0 %1842
      %1844 = vrot.lane.b32.xlu0 %v1759, 112
      %v1845 = vpop.permute.xlu0 %1844
      %v1846 = vsel %vm603, %v1835, %v1837
      %v1847 = vsel %vm603, %v1837, %v1839
      %v1848 = vsel %vm603, %v1841, %v1843
      %v1849 = vsel %vm603, %v1843, %v1845
      %1854 = vrot.lane.b32.xlu0 %v1740, 111
      %v1855 = vpop.permute.xlu0 %1854
      %1856 = vrot.lane.b32.xlu0 %v1732, 111
      %v1857 = vpop.permute.xlu0 %1856
      %1858 = vrot.lane.b32.xlu0 %v1742, 111
      %v1859 = vpop.permute.xlu0 %1858
      %1860 = vrot.lane.b32.xlu0 %v1741, 111
      %v1861 = vpop.permute.xlu0 %1860
      %1862 = vrot.lane.b32.xlu0 %v1733, 111
      %v1863 = vpop.permute.xlu0 %1862
      %1864 = vrot.lane.b32.xlu0 %v1743, 111
      %v1865 = vpop.permute.xlu0 %1864
      %v1866 = vsel %vm624, %v1855, %v1857
      %v1867 = vsel %vm624, %v1857, %v1859
      %v1868 = vsel %vm624, %v1861, %v1863
      %v1869 = vsel %vm624, %v1863, %v1865
      %1880 = vrot.lane.b32.xlu0 %v1760, 110
      %v1881 = vpop.permute.xlu0 %1880
      %1882 = vrot.lane.b32.xlu0 %v1761, 110
      %v1883 = vpop.permute.xlu0 %1882
      %1884 = vrot.lane.b32.xlu0 %v1762, 110
      %v1885 = vpop.permute.xlu0 %1884
      %1886 = vrot.lane.b32.xlu0 %v1763, 110
      %v1887 = vpop.permute.xlu0 %1886
      %1888 = vrot.lane.b32.xlu0 %v1764, 110
      %v1889 = vpop.permute.xlu0 %1888
      %1890 = vrot.lane.b32.xlu0 %v1765, 110
      %v1891 = vpop.permute.xlu0 %1890
      %v1892 = vsel %vm651, %v1881, %v1883
      %v1893 = vsel %vm651, %v1883, %v1885
      %v1894 = vsel %vm651, %v1887, %v1889
      %v1895 = vsel %vm651, %v1889, %v1891
      %1906 = vrot.lane.b32.xlu0 %v1766, 96
      %v1907 = vpop.permute.xlu0 %1906
      %1908 = vrot.lane.b32.xlu0 %v1767, 96
      %v1909 = vpop.permute.xlu0 %1908
      %1910 = vrot.lane.b32.xlu0 %v1768, 96
      %v1911 = vpop.permute.xlu0 %1910
      %1912 = vrot.lane.b32.xlu0 %v1769, 96
      %v1913 = vpop.permute.xlu0 %1912
      %1914 = vrot.lane.b32.xlu0 %v1770, 96
      %v1915 = vpop.permute.xlu0 %1914
      %1916 = vrot.lane.b32.xlu0 %v1771, 96
      %v1917 = vpop.permute.xlu0 %1916
      %v1918 = vsel %vm678, %v1907, %v1909
      %v1919 = vsel %vm678, %v1909, %v1911
      %v1920 = vsel %vm678, %v1913, %v1915
      %v1921 = vsel %vm678, %v1915, %v1917
      %1926 = vrot.lane.b32.xlu0 %v1740, 95
      %v1927 = vpop.permute.xlu0 %1926
      %1928 = vrot.lane.b32.xlu0 %v1732, 95
      %v1929 = vpop.permute.xlu0 %1928
      %1930 = vrot.lane.b32.xlu0 %v1742, 95
      %v1931 = vpop.permute.xlu0 %1930
      %1932 = vrot.lane.b32.xlu0 %v1741, 95
      %v1933 = vpop.permute.xlu0 %1932
      %1934 = vrot.lane.b32.xlu0 %v1733, 95
      %v1935 = vpop.permute.xlu0 %1934
      %1936 = vrot.lane.b32.xlu0 %v1743, 95
      %v1937 = vpop.permute.xlu0 %1936
      %v1938 = vsel %vm699, %v1927, %v1929
      %v1939 = vsel %vm699, %v1929, %v1931
      %v1940 = vsel %vm699, %v1933, %v1935
      %v1941 = vsel %vm699, %v1935, %v1937
      %1952 = vrot.lane.b32.xlu0 %v1772, 94
      %v1953 = vpop.permute.xlu0 %1952
      %1954 = vrot.lane.b32.xlu0 %v1773, 94
      %v1955 = vpop.permute.xlu0 %1954
      %1956 = vrot.lane.b32.xlu0 %v1774, 94
      %v1957 = vpop.permute.xlu0 %1956
      %1958 = vrot.lane.b32.xlu0 %v1775, 94
      %v1959 = vpop.permute.xlu0 %1958
      %1960 = vrot.lane.b32.xlu0 %v1776, 94
      %v1961 = vpop.permute.xlu0 %1960
      %1962 = vrot.lane.b32.xlu0 %v1777, 94
      %v1963 = vpop.permute.xlu0 %1962
      %v1964 = vsel %vm726, %v1953, %v1955
      %v1965 = vsel %vm726, %v1955, %v1957
      %v1966 = vsel %vm726, %v1959, %v1961
      %v1967 = vsel %vm726, %v1961, %v1963
      %v1972 = vld [vmem:[%s4] sm:$0xff]
      %v1973 = vld [vmem:[%s4 + $0x8] sm:$0xff]
      %v1974 = vld [vmem:[%s5] sm:$0xff]
      %1976 = vset.pattern.permute.xlu0 0
      %1977 = vperm.xlu0 %1976, %v1974
      %v1978 = vpop.permute.xlu0 %1977
      %v1981 = vsel %vm477, %v1973, 0
      %1983 = vmatpush.msra.mxu0 %v1940
      %1984 = vmatpush.msra.mxu0 %v1938
      %1985 = vmatpush.msra.mxu0 %v1920
      %1986 = vmatpush.msra.mxu0 %v1918
      %1987 = vmatpush.msra.mxu0 %v1894
      %1988 = vmatpush.msra.mxu0 %v1892
      %1989 = vmatpush.msra.mxu0 %v1868
      %1990 = vmatpush.msra.mxu0 %v1866
      %1991 = vmatpush.msra.mxu0 %v1848
      %1992 = vmatpush.msra.mxu0 %v1846
      %1993 = vmatpush.msra.mxu0 %v1822
      %1994 = vmatpush.msra.mxu0 %v1820
      %1995 = vmatpush.msra.mxu0 %v1796
      %1996 = vmatpush.msra.mxu0 %v1794
      %1997 = vmatpush.msra.mxu0 %v1746
      %1998 = vmatpush.msra.mxu0 %v1744
      %1999 = vmatmul.f32.gmra.mxu0 %v1972
      %v2000 = vpop.f32.mrf.mxu0
      %v2001 = vadd.f32 %v1978, %v2000
      %2002 = vdwg.mxu0
      %2003 = vmatpush.msra.mxu0 0.0
      %2004 = vmatpush.msra.mxu0 0.0
      %2005 = vmatpush.msra.mxu0 0.0
      %2006 = vmatpush.msra.mxu0 0.0
      %2007 = vmatpush.msra.mxu0 0.0
      %2008 = vmatpush.msra.mxu0 0.0
      %2009 = vmatpush.msra.mxu0 0.0
      %2010 = vmatpush.msra.mxu0 0.0
      %2011 = vmatpush.msra.mxu0 0.0
      %2012 = vmatpush.msra.mxu0 0.0
      %2013 = vmatpush.msra.mxu0 0.0
      %2014 = vmatpush.msra.mxu0 0.0
      %2015 = vmatpush.msra.mxu0 0.0
      %2016 = vmatpush.msra.mxu0 0.0
      %2017 = vmatpush.msra.mxu0 %v1966
      %2018 = vmatpush.msra.mxu0 %v1964
      %2019 = vmatmul.f32.gmra.mxu0 %v1981
      %v2020 = vpop.f32.mrf.mxu0
      %v2021 = vadd.f32 %v2001, %v2020
      %2022 = vdwg.mxu0
      %2023 = vmatpush.msra.mxu0 %v1941
      %2024 = vmatpush.msra.mxu0 %v1939
      %2025 = vmatpush.msra.mxu0 %v1921
      %2026 = vmatpush.msra.mxu0 %v1919
      %2027 = vmatpush.msra.mxu0 %v1895
      %2028 = vmatpush.msra.mxu0 %v1893
      %2029 = vmatpush.msra.mxu0 %v1869
      %2030 = vmatpush.msra.mxu0 %v1867
      %2031 = vmatpush.msra.mxu0 %v1849
      %2032 = vmatpush.msra.mxu0 %v1847
      %2033 = vmatpush.msra.mxu0 %v1823
      %2034 = vmatpush.msra.mxu0 %v1821
      %2035 = vmatpush.msra.mxu0 %v1797
      %2036 = vmatpush.msra.mxu0 %v1795
      %2037 = vmatpush.msra.mxu0 %v1747
      %2038 = vmatpush.msra.mxu0 %v1745
      %2039 = vmatmul.f32.gmra.mxu0 %v1972
      %v2040 = vpop.f32.mrf.mxu0
      %v2041 = vadd.f32 %v1978, %v2040
      %2042 = vdwg.mxu0
      %2043 = vmatpush.msra.mxu0 0.0
      %2044 = vmatpush.msra.mxu0 0.0
      %2045 = vmatpush.msra.mxu0 0.0
      %2046 = vmatpush.msra.mxu0 0.0
      %2047 = vmatpush.msra.mxu0 0.0
      %2048 = vmatpush.msra.mxu0 0.0
      %2049 = vmatpush.msra.mxu0 0.0
      %2050 = vmatpush.msra.mxu0 0.0
      %2051 = vmatpush.msra.mxu0 0.0
      %2052 = vmatpush.msra.mxu0 0.0
      %2053 = vmatpush.msra.mxu0 0.0
      %2054 = vmatpush.msra.mxu0 0.0
      %2055 = vmatpush.msra.mxu0 0.0
      %2056 = vmatpush.msra.mxu0 0.0
      %2057 = vmatpush.msra.mxu0 %v1967
      %2058 = vmatpush.msra.mxu0 %v1965
      %2059 = vmatmul.f32.gmra.mxu0 %v1981
      %v2060 = vpop.f32.mrf.mxu0
      %v2061 = vadd.f32 %v2041, %v2060
      %2062 = vdwg.mxu0
      %vm2063 = vcmp.ge.f32.partialorder %v2021, 0.0
      %vm2064 = vcmp.ge.f32.partialorder %v2061, 0.0
      %v2065 = vmul.f32 %v2021, 0.05
      %v2066 = vmul.f32 %v2061, 0.05
      %v2067 = vsel %vm2063, %v2021, %v2065
      %v2068 = vsel %vm2064, %v2061, %v2066
      %v2069 = vld [vmem:[%s6] sm:$0xff]
      %v2070 = vld [vmem:[%s6 + $0x8] sm:$0xff]
      %v2071 = vld [vmem:[%s7] sm:$0xff]
      %v2072 = vld [vmem:[%s7 + $0x8] sm:$0xff]
      %2074 = vset.pattern.permute.xlu0 0
      %2075 = vperm.xlu0 %2074, %v2071
      %v2076 = vpop.permute.xlu0 %2075
      %2079 = vset.pattern.permute.xlu0 0
      %2080 = vperm.xlu0 %2079, %v2072
      %v2081 = vpop.permute.xlu0 %2080
      %v2084 = vsel %vm507, %v2069, 0
      %v2087 = vsel %vm507, %v2070, 0
      %2089 = vmatpush.msra.mxu0 0.0
      %2090 = vmatpush.msra.mxu0 0.0
      %2091 = vmatpush.msra.mxu0 0.0
      %2092 = vmatpush.msra.mxu0 0.0
      %2093 = vmatpush.msra.mxu0 0.0
      %2094 = vmatpush.msra.mxu0 0.0
      %2095 = vmatpush.msra.mxu0 0.0
      %2096 = vmatpush.msra.mxu0 0.0
      %2097 = vmatpush.msra.mxu0 0.0
      %2098 = vmatpush.msra.mxu0 0.0
      %2099 = vmatpush.msra.mxu0 0.0
      %2100 = vmatpush.msra.mxu0 0.0
      %2101 = vmatpush.msra.mxu0 %v2067
      %2102 = vmatpush.msra.mxu0 %v1702
      %2103 = vmatpush.msra.mxu0 %v1289
      %2104 = vmatpush.msra.mxu0 %v876
      %2105 = vmatmul.f32.gmra.mxu0 %v2084
      %v2106 = vpop.f32.mrf.mxu0
      %v2107 = vadd.f32 %v2076, %v2106
      %2108 = vmatmul.f32.gmra.mxu0 %v2087
      %v2109 = vpop.f32.mrf.mxu0
      %v2110 = vadd.f32 %v2081, %v2109
      %2111 = vdwg.mxu0
      %2112 = vmatpush.msra.mxu0 0.0
      %2113 = vmatpush.msra.mxu0 0.0
      %2114 = vmatpush.msra.mxu0 0.0
      %2115 = vmatpush.msra.mxu0 0.0
      %2116 = vmatpush.msra.mxu0 0.0
      %2117 = vmatpush.msra.mxu0 0.0
      %2118 = vmatpush.msra.mxu0 0.0
      %2119 = vmatpush.msra.mxu0 0.0
      %2120 = vmatpush.msra.mxu0 0.0
      %2121 = vmatpush.msra.mxu0 0.0
      %2122 = vmatpush.msra.mxu0 0.0
      %2123 = vmatpush.msra.mxu0 0.0
      %2124 = vmatpush.msra.mxu0 %v2068
      %2125 = vmatpush.msra.mxu0 %v1703
      %2126 = vmatpush.msra.mxu0 %v1290
      %2127 = vmatpush.msra.mxu0 %v877
      %2128 = vmatmul.f32.gmra.mxu0 %v2084
      %v2129 = vpop.f32.mrf.mxu0
      %v2130 = vadd.f32 %v2076, %v2129
      %2131 = vmatmul.f32.gmra.mxu0 %v2087
      %v2132 = vpop.f32.mrf.mxu0
      %v2133 = vadd.f32 %v2081, %v2132
      %2134 = vdwg.mxu0
      %vm2135 = vcmp.ge.f32.partialorder %v2107, 0.0
      %vm2136 = vcmp.ge.f32.partialorder %v2130, 0.0
      %vm2137 = vcmp.ge.f32.partialorder %v2110, 0.0
      %vm2138 = vcmp.ge.f32.partialorder %v2133, 0.0
      %v2139 = vmul.f32 %v2107, 0.05
      %v2140 = vmul.f32 %v2130, 0.05
      %v2141 = vmul.f32 %v2110, 0.05
      %v2142 = vmul.f32 %v2133, 0.05
      %v2143 = vsel %vm2135, %v2107, %v2139
      %v2144 = vsel %vm2136, %v2130, %v2140
      %v2145 = vsel %vm2137, %v2110, %v2141
      %v2146 = vsel %vm2138, %v2133, %v2142
      %v2147 = vadd.f32 %v2143, %v2144
      %2148 = vadd.xlane.f32.xlu0 %v2147
      %v2149 = vpop.xlane.xlu0 %2148
      %v2150 = vadd.f32 %v2145, %v2146
      %2151 = vadd.xlane.f32.xlu0 %v2150
      %v2152 = vpop.xlane.xlu0 %2151
      %v2153 = vmul.f32 %v2149, 0.00390625
      %v2154 = vmul.f32 %v2152, 0.00390625
      %v2155 = vsub.f32 %v2143, %v2153
      %v2156 = vsub.f32 %v2144, %v2153
      %v2157 = vsub.f32 %v2145, %v2154
      %v2158 = vsub.f32 %v2146, %v2154
      %v2159 = vmul.f32 %v2155, %v2155
      %v2160 = vmul.f32 %v2156, %v2156
      %v2161 = vmul.f32 %v2157, %v2157
      %v2162 = vmul.f32 %v2158, %v2158
      %v2163 = vadd.f32 %v2159, %v2160
      %2164 = vadd.xlane.f32.xlu0 %v2163
      %v2165 = vpop.xlane.xlu0 %2164
      %v2166 = vadd.f32 %v2161, %v2162
      %2167 = vadd.xlane.f32.xlu0 %v2166
      %v2168 = vpop.xlane.xlu0 %2167
      %v2169 = vmul.f32 %v2165, 0.00390625
      %v2170 = vmul.f32 %v2168, 0.00390625
      %v2171 = vrsqrt.pop %v2169
      %v2172 = vmul.f32 %v2171, %v2169
      %v2173 = vmul.f32 %v2172, %v2171
      %v2174 = vmul.f32 0.5, %v2173
      %v2175 = vsub.f32 1.5, %v2174
      %v2176 = vmul.f32 %v2171, %v2175
      %v2177 = vmul.f32 %v2169, %v2176
      %vm2178 = vcmp.eq.f32.partialorder %v2169, inf
      %v2179 = vsel %vm2178, %v2169, %v2177
      %vm2180 = vcmp.eq.f32.partialorder %v2169, 0.0
      %v2181 = vand.u32 %v2169, 2147483648
      %v2182 = vsel %vm2180, %v2181, %v2179
      %v2183 = vrsqrt.pop %v2170
      %v2184 = vmul.f32 %v2183, %v2170
      %v2185 = vmul.f32 %v2184, %v2183
      %v2186 = vmul.f32 0.5, %v2185
      %v2187 = vsub.f32 1.5, %v2186
      %v2188 = vmul.f32 %v2183, %v2187
      %v2189 = vmul.f32 %v2170, %v2188
      %vm2190 = vcmp.eq.f32.partialorder %v2170, inf
      %v2191 = vsel %vm2190, %v2170, %v2189
      %vm2192 = vcmp.eq.f32.partialorder %v2170, 0.0
      %v2193 = vand.u32 %v2170, 2147483648
      %v2194 = vsel %vm2192, %v2193, %v2191
      %v2195 = vadd.f32 %v2182, %v2153
      %v2196 = vadd.f32 %v2194, %v2154
      %v2197 = vld [vmem:[%s8] sm:$0xff]
      %v2198 = vld [vmem:[%s8 + $0x8] sm:$0xff]
      %v2199 = vmul.f32 %v2197, %v2195
      %v2200 = vmul.f32 %v2198, %v2196
      %v2201 = vsel %vm462, %v2199, 0.0
      %v2202 = vsel %vm462, %v2200, 0.0
      %v2203 = vadd.f32 %v2201, %v2202
      %v2204 = vrot.slane %v2203, 4
      %v2205 = vadd.f32 %v2203, %v2204
      %v2206 = vrot.slane %v2205, 2
      %v2207 = vadd.f32 %v2205, %v2206
      %v2208 = vrot.slane %v2207, 1
      %v2209 = vadd.f32 %v2207, %v2208
      %v2210 = vld [vmem:[%s9] sm:$0x1]
      %v2211 = vadd.f32 %v2209, %v2210
      %vm2212 = vcmp.ge.f32.partialorder %v2211, 0.0
      %v2213 = vmul.f32 %v2211, 0.05
      %v2214 = vsel %vm2212, %v2211, %v2213
      %v2215 = vld [vmem:[%s10] sm:$0xff]
      %v2216 = vld [vmem:[%s10 + $0x8] sm:$0xff]
      %v2217 = vperm.slane %v2214, 0
      %v2218 = vmul.f32 %v2215, %v2217
      %v2219 = vmul.f32 %v2216, %v2217
      %v2220 = vsel %vm462, %v2218, 0.0
      %2221 = vadd.xlane.f32.xlu0 %v2220
      %v2222 = vpop.xlane.xlu0 %2221
      %v2223 = vsel %vm462, %v2219, 0.0
      %2224 = vadd.xlane.f32.xlu0 %v2223
      %v2225 = vpop.xlane.xlu0 %2224
      %v2226 = vld [vmem:[%s11] sm:$0xff]
      %v2227 = vld [vmem:[%s11 + $0x8] sm:$0xff]
      %v2228 = vadd.f32 %v2222, %v2226
      %v2229 = vadd.f32 %v2225, %v2227
      %v2230 = vsub.f32 0.0, %v2228
      %v2231 = vsub.f32 0.0, %v2229
      %v2232 = vmul.f32 %v2230, 1.442695
      %v2233 = vpow.pop %v2232
      %v2234 = vmul.f32 %v2231, 1.442695
      %v2235 = vpow.pop %v2234
      %v2236 = vadd.f32 %v2233, 1.0
      %v2237 = vadd.f32 %v2235, 1.0
      %v2238 = vrcp.pop %v2236
      %v2239 = vmul.f32 %v2236, %v2238
      %v2240 = vsub.f32 1.0, %v2239
      %v2241 = vmul.f32 %v2238, %v2240
      %v2242 = vadd.f32 %v2238, %v2241
      %vm2243 = vweird.f32 %v2236
      %vm2244 = vweird.f32 %v2238
      %vm2245 = vmor %vm2243, %vm2244
      %v2246 = vsel %vm2245, %v2238, %v2242
      %v2247 = vand.u32 2147483647, %v2236
      %vm2248 = vcmp.eq.f32.partialorder %v2247, 8.507059e+37
      %v2249 = vand.u32 %v2236, 2147483648
      %v2250 = vor.u32 1.1754944e-38, %v2249
      %v2251 = vsel %vm2248, %v2250, %v2246
      %v2252 = vmul.f32 1.0, %v2251
      %v2253 = vrcp.pop %v2237
      %v2254 = vmul.f32 %v2237, %v2253
      %v2255 = vsub.f32 1.0, %v2254
      %v2256 = vmul.f32 %v2253, %v2255
      %v2257 = vadd.f32 %v2253, %v2256
      %vm2258 = vweird.f32 %v2237
      %vm2259 = vweird.f32 %v2253
      %vm2260 = vmor %vm2258, %vm2259
      %v2261 = vsel %vm2260, %v2253, %v2257
      %v2262 = vand.u32 2147483647, %v2237
      %vm2263 = vcmp.eq.f32.partialorder %v2262, 8.507059e+37
      %v2264 = vand.u32 %v2237, 2147483648
      %v2265 = vor.u32 1.1754944e-38, %v2264
      %v2266 = vsel %vm2263, %v2265, %v2261
      %v2267 = vmul.f32 1.0, %v2266
      %2269 = vset.pattern.permute.xlu0 0
      %2270 = vperm.xlu0 %2269, %v2252
      %v2271 = vpop.permute.xlu0 %2270
      %2274 = vset.pattern.permute.xlu0 0
      %2275 = vperm.xlu0 %2274, %v2267
      %v2276 = vpop.permute.xlu0 %2275
      %v2278 = vmul.f32 %v2143, %v2271
      %v2279 = vmul.f32 %v2144, %v2271
      %v2280 = vmul.f32 %v2145, %v2276
      %v2281 = vmul.f32 %v2146, %v2276
      %v2282 = vadd.f32 %v2278, %v414
      %v2283 = vadd.f32 %v2279, %v415
      %v2284 = vadd.f32 %v2280, %v416
      %v2285 = vadd.f32 %v2281, %v417
      %2286 = vst [vmem:[%s413] sm:$0xff] %v2282
      %2287 = vst [vmem:[%s413 + $0x8] sm:$0xff] %v2283
      %2288 = vst [vmem:[%s413 + $0x10] sm:$0xff] %v2284
      %2289 = vst [vmem:[%s413 + $0x18] sm:$0xff] %v2285
      %p2290 = scmp.lt.s32.totalorder %s23, 1
      %s2291 = scalar_select %p2290, %s23, 1
      %s2292 = smul.addr %s2291, 4
      %s2293 = smul.addr %s2292, 8
      %s2294 = scalar_lea.vmem %s12, %s2293
      // Predicated region
      $region69: #{main_block_forward.1} parent=67 // pred_check
        %p2295 = pneg %p298
      $region70: #{main_block_forward.1} parent=67 // pred_check_branch
        %2297 = sbr.rel (%p2295) target = $region72
      $region71: #{main_block_forward.1} parent=67 // pred_region
        _
      $region72: #{main_block_forward.1} parent=67 // pred_fallthru
        _
    $region68: #{main_block_forward.1} parent=5 // pred_fallthru
      _
    %p2298 = scmp.le.s32.totalorder 2, %s18
    // Predicated region
    $region73: #{main_block_forward.1} parent=5 // pred_check
      %p2299 = pneg %p2298
    $region74: #{main_block_forward.1} parent=5 // pred_check_branch
      %2301 = sbr.rel (%p2299) target = $region76
    $region75: #{main_block_forward.1} parent=5 // pred_region
      %s2302 = ssub.s32 %s18, 2
      // Predicated region
      $region77: #{main_block_forward.1} parent=75 // pred_check
        %p2303 = pneg %p304
      $region78: #{main_block_forward.1} parent=75 // pred_check_branch
        %2305 = sbr.rel (%p2303) target = $region80
      $region79: #{main_block_forward.1} parent=75 // pred_region
        %p2306 = scmp.lt.s32.totalorder %s24, 1
        %s2307 = scalar_select %p2306, %s24, 1
        %s2308 = smul.addr %s2307, 4
        %s2309 = smul.addr %s2308, 8
        %s2310 = scalar_lea.vmem %s12, %s2309
      $region80: #{main_block_forward.1} parent=75 // pred_fallthru
        _
    $region76: #{main_block_forward.1} parent=5 // pred_fallthru
      _
  $region6: #{main_block_forward.1} parent=0 // loop_footer
    %s22 = sadd.s32 1, %s18
  $region7: #{main_block_forward.1} parent=0 // loop_footer_branch
    %17 = sbr.rel target = $region3
  $region8: #{main_block_forward.1} parent=0 // loop_exit
    _

</llo_original>
